<compile_context>
chip_gen: v7x
topology: tpu7x:2x2x1
jax: 0.10.0
libtpu: 0.0.40
codegen_flags: <defaults>
</compile_context>

<pallas_src>
import functools

import jax
import jax.numpy as jnp
import numpy as np
from jax.experimental import pallas as pl
from jax.experimental.pallas import tpu as pltpu


# ---------------------------------------------------------------------------
# Tiling / budgeting helpers
# ---------------------------------------------------------------------------
def _round_up(x, m):
    return ((x + m - 1) // m) * m


def _vmem_budget_bytes():
    """Per-generation VMEM budget (~0.75x capacity; 48 MiB if query fails)."""
    cap = 64 << 20
    try:
        info = pltpu.get_tpu_info()
        cap = int(getattr(info, "vmem_capacity_bytes", cap)) or cap
    except Exception:
        pass
    return min(int(cap * 3 // 4), 100 << 20)


def _prop_tiling(n, itemsize, budget):
    """(n_pad, tm, tk) for the propagation matmuls.  Large graphs get 512-row
    tiles and the widest 128-aligned tk (up to n_pad) whose double-buffered
    adjacency tiles stay within ~1/4 of the VMEM budget, so each grid step
    moves MiBs of adj and the ~0.35us/step overhead is amortized."""
    if n <= 2048:
        n_pad = _round_up(n, 128)
        tm = 512
        while n_pad % tm:
            tm //= 2                      # 512 -> 256 -> 128 (always divides)
        return n_pad, tm, n_pad           # whole reduction in one sweep
    tm = 512
    n_pad = _round_up(n, tm)
    tile_budget = budget // 4
    for tk in (n_pad, 8192, 4096, 2048, 1024, 512, 256, 128):
        if n_pad % tk == 0 and 2 * tm * tk * itemsize <= tile_budget:
            return n_pad, tm, tk
    return n_pad, tm, 128


def _fused_vmem_bytes(n_pad, h_pad, tm, tk, itm):
    resident = (2 * n_pad * h_pad * itm       # resident x0 (compute dtype) input
                + 2 * n_pad * h_pad * itm     # cur ping-pong scratch
                + n_pad * h_pad * 4)          # f32 running layer-sum scratch
    streamed = (2 * tm * tk * itm             # double-buffered adjacency tiles
                + 4 * tm * h_pad * 4          # x0 f32 in + mean out tiles
                + tm * h_pad * 4)             # f32 row-tile accumulator
    return resident + streamed + (2 << 20)


def _layer_vmem_bytes(n_pad, h_pad, tm, tk, itm, cur_resident):
    cur_bytes = 2 * (n_pad if cur_resident else tk) * h_pad * itm
    return (cur_bytes
            + 2 * tm * tk * itm               # adjacency tiles
            + 2 * tm * h_pad * 4              # running-sum input tiles
            + 2 * tm * h_pad * (itm + 4)      # cur / sum output tiles
            + tm * h_pad * 4                  # accumulator scratch
            + (2 << 20))


def _dot(a, b):
    # bf16 operands hit the native MXU path; f32 operands request the
    # multi-pass full-precision matmul so the f32 validation path stays exact.
    prec = jax.lax.Precision.HIGHEST if a.dtype == jnp.float32 else None
    return jnp.dot(a, b, preferred_element_type=jnp.float32, precision=prec)


# ---------------------------------------------------------------------------
# Kernel 1: fused user/book projection  x0 = [user_x@Wu+bu ; book_x@Wb+bb]
# ---------------------------------------------------------------------------
def _fused_proj_kernel(x_ref, w_ref, o_hi_ref, o_lo_ref):
    y = _dot(x_ref[...], w_ref[...])
    o_hi_ref[...] = y                          # f32 copy: layer-0 term of mean
    o_lo_ref[...] = y.astype(o_lo_ref.dtype)   # compute-dtype copy for the MXU


def fused_projection_pallas(x_all, w_all, *, tm, lo_dtype, vmem_limit):
    n_pad, f_pad = x_all.shape
    h_pad = w_all.shape[1]
    return pl.pallas_call(
        _fused_proj_kernel,
        out_shape=(
            jax.ShapeDtypeStruct((n_pad, h_pad), jnp.float32),
            jax.ShapeDtypeStruct((n_pad, h_pad), lo_dtype),
        ),
        grid_spec=pltpu.PrefetchScalarGridSpec(
            num_scalar_prefetch=0,
            grid=(n_pad // tm,),
            in_specs=[
                pl.BlockSpec((tm, f_pad), lambda i: (i, 0)),
                pl.BlockSpec((f_pad, h_pad), lambda i: (0, 0)),
            ],
            out_specs=[
                pl.BlockSpec((tm, h_pad), lambda i: (i, 0)),
                pl.BlockSpec((tm, h_pad), lambda i: (i, 0)),
            ],
        ),
        compiler_params=pltpu.CompilerParams(
            dimension_semantics=("parallel",),
            vmem_limit_bytes=vmem_limit,
        ),
    )(x_all, w_all)


# ---------------------------------------------------------------------------
# Kernel 2 (primary): ALL LightGCN layers fused in one pallas_call.
#   grid = (layer, row_tile, col_tile); adj streamed, everything else resident.
# ---------------------------------------------------------------------------
def _fused_lightgcn_kernel(x0f_ref, x0lo_ref, adj_ref, out_ref,
                           cur_ref, sum_ref, acc_ref, *, num_layers, inv_total):
    l = pl.program_id(0)
    i = pl.program_id(1)
    k = pl.program_id(2)
    nk = pl.num_programs(2)
    tm = acc_ref.shape[0]
    tk = adj_ref.shape[1]
    n_pad = x0lo_ref.shape[0]
    parity = l & 1

    @pl.when(k == 0)
    def _():
        acc_ref[...] = jnp.zeros_like(acc_ref)

    col0 = pl.multiple_of(k * tk, tk)

    def accum(block):
        acc_ref[...] += _dot(adj_ref[...], block)

    # Layer 0 reads the resident projected features; layer l>=1 reads the
    # previous layer's output from ping-pong slot (l-1)&1 of the cur scratch
    # (slot s occupies rows [s*n_pad, (s+1)*n_pad) of the 2*n_pad scratch).
    @pl.when(l == 0)
    def _():
        accum(x0lo_ref[pl.ds(col0, tk), :])

    @pl.when((l > 0) & (parity == 1))
    def _():
        accum(cur_ref[pl.ds(col0, tk), :])              # read slot 0

    @pl.when((l > 0) & (parity == 0))
    def _():
        accum(cur_ref[pl.ds(n_pad + col0, tk), :])      # read slot 1

    @pl.when(k == nk - 1)
    def _():
        row0 = pl.multiple_of(i * tm, tm)
        nxt = acc_ref[...]
        prev = jnp.where(l == 0, x0f_ref[...], sum_ref[pl.ds(row0, tm), :])
        total = prev + nxt
        sum_ref[pl.ds(row0, tm), :] = total

        # Final layer's cur is never consumed -> skip the dead write.
        @pl.when(l < num_layers - 1)
        def _():
            nxt_lo = nxt.astype(cur_ref.dtype)

            @pl.when(parity == 0)
            def _():
                cur_ref[pl.ds(row0, tm), :] = nxt_lo            # write slot 0

            @pl.when(parity == 1)
            def _():
                cur_ref[pl.ds(n_pad + row0, tm), :] = nxt_lo    # write slot 1

        @pl.when(l == num_layers - 1)
        def _():
            out_ref[...] = total * inv_total


def fused_lightgcn_pallas(x0_f32, x0_lo, adj, *, num_layers, tm, tk, vmem_limit):
    n_pad, h_pad = x0_f32.shape
    cd = x0_lo.dtype
    kern = functools.partial(_fused_lightgcn_kernel, num_layers=num_layers,
                             inv_total=1.0 / float(num_layers + 1))
    return pl.pallas_call(
        kern,
        out_shape=jax.ShapeDtypeStruct((n_pad, h_pad), jnp.float32),
        grid_spec=pltpu.PrefetchScalarGridSpec(
            num_scalar_prefetch=0,
            grid=(num_layers, n_pad // tm, n_pad // tk),
            in_specs=[
                pl.BlockSpec((tm, h_pad), lambda l, i, k: (i, 0)),     # x0 (f32)
                pl.BlockSpec((n_pad, h_pad), lambda l, i, k: (0, 0)),  # x0 resident
                pl.BlockSpec((tm, tk), lambda l, i, k: (i, k)),        # adj streamed
                # NOTE: pipeline_mode=pl.Buffered(3) on the adj spec is a knob
                # if DMA stays exposed once VMEM headroom exists.
            ],
            out_specs=pl.BlockSpec((tm, h_pad), lambda l, i, k: (i, 0)),
            scratch_shapes=[
                pltpu.VMEM((2 * n_pad, h_pad), cd),         # cur ping-pong buffer
                pltpu.VMEM((n_pad, h_pad), jnp.float32),    # f32 running layer-sum
                pltpu.VMEM((tm, h_pad), jnp.float32),       # row-tile accumulator
            ],
        ),
        compiler_params=pltpu.CompilerParams(
            # layer and row axes carry VMEM-resident state -> "arbitrary".
            dimension_semantics=("arbitrary", "arbitrary", "arbitrary"),
            vmem_limit_bytes=vmem_limit,
        ),
    )(x0_f32, x0_lo, adj)


# ---------------------------------------------------------------------------
# Kernel 3 (fallback): one LightGCN layer per pallas_call, cur VMEM-resident,
# running sum aliased input->output, no cur output on the last layer.
# ---------------------------------------------------------------------------
def _layer_body(adj_ref, cur_ref, sum_ref, cur_out_ref, sum_out_ref, acc_ref,
                *, scale, cur_resident):
    k = pl.program_id(1)
    tk = adj_ref.shape[1]

    @pl.when(k == 0)
    def _():
        acc_ref[...] = jnp.zeros_like(acc_ref)

    if cur_resident:
        col0 = pl.multiple_of(k * tk, tk)
        cur_blk = cur_ref[pl.ds(col0, tk), :]
    else:
        cur_blk = cur_ref[...]
    acc_ref[...] += _dot(adj_ref[...], cur_blk)

    @pl.when(k == pl.num_programs(1) - 1)
    def _():
        nxt = acc_ref[...]
        if cur_out_ref is not None:
            cur_out_ref[...] = nxt.astype(cur_out_ref.dtype)
        total = sum_ref[...] + nxt
        if scale != 1.0:                      # static: last layer only
            total = total * scale
        sum_out_ref[...] = total


def _layer_kernel_mid(adj_ref, cur_ref, sum_ref, cur_out_ref, sum_out_ref,
                      acc_ref, *, cur_resident):
    _layer_body(adj_ref, cur_ref, sum_ref, cur_out_ref, sum_out_ref, acc_ref,
                scale=1.0, cur_resident=cur_resident)


def _layer_kernel_last(adj_ref, cur_ref, sum_ref, sum_out_ref, acc_ref,
                       *, scale, cur_resident):
    _layer_body(adj_ref, cur_ref, sum_ref, None, sum_out_ref, acc_ref,
                scale=scale, cur_resident=cur_resident)


def lightgcn_layer_pallas(adj, cur, run_sum, *, scale, tm, tk, last,
                          cur_resident, vmem_limit):
    n_pad = adj.shape[0]
    h_pad = cur.shape[1]
    cd = cur.dtype

    if cur_resident:
        cur_spec = pl.BlockSpec((n_pad, h_pad), lambda i, k: (0, 0))   # resident
    else:
        cur_spec = pl.BlockSpec((tk, h_pad), lambda i, k: (k, 0))      # streamed
    in_specs = [
        pl.BlockSpec((tm, tk), lambda i, k: (i, k)),                   # adj streamed
        cur_spec,
        pl.BlockSpec((tm, h_pad), lambda i, k: (i, 0)),                # prev layer-sum
    ]
    out_tile = pl.BlockSpec((tm, h_pad), lambda i, k: (i, 0))

    if last:
        kern = functools.partial(_layer_kernel_last, scale=float(scale),
                                 cur_resident=cur_resident)
        out_shape = jax.ShapeDtypeStruct((n_pad, h_pad), jnp.float32)
        out_specs = out_tile
        io_alias = {2: 0}          # run_sum input -> sum output (in place)
    else:
        kern = functools.partial(_layer_kernel_mid, cur_resident=cur_resident)
        out_shape = (jax.ShapeDtypeStruct((n_pad, h_pad), cd),
                     jax.ShapeDtypeStruct((n_pad, h_pad), jnp.float32))
        out_specs = (out_tile, out_tile)
        io_alias = {2: 1}          # run_sum input -> sum output (in place)

    return pl.pallas_call(
        kern,
        out_shape=out_shape,
        grid_spec=pltpu.PrefetchScalarGridSpec(
            num_scalar_prefetch=0,
            grid=(n_pad // tm, n_pad // tk),          # reduction axis last
            in_specs=in_specs,
            out_specs=out_specs,
            scratch_shapes=[pltpu.VMEM((tm, h_pad), jnp.float32)],
        ),
        input_output_aliases=io_alias,
        compiler_params=pltpu.CompilerParams(
            dimension_semantics=("parallel", "arbitrary"),  # row axis -> v7x cores
            vmem_limit_bytes=vmem_limit,
        ),
    )(adj, cur, run_sum)


# ---------------------------------------------------------------------------
# Glue (plain JAX): normalized adjacency from edge indices
# ---------------------------------------------------------------------------
def build_lightgcn_adjacency(u_idx, b_idx, num_users, num_books, n_pad):
    """Reproduces UserBookGNN._lightgcn_forward + LightGCNConv edge math exactly.

    NOTE: the PyTorch code uses `user_to_book = all_edges` *without* adding the
    num_users offset to the book (destination) index; that behavior is kept
    faithfully (book destinations alias node rows 0..num_books-1)."""
    n = num_users + num_books
    row = jnp.concatenate([u_idx, b_idx + num_users])   # source nodes
    col = jnp.concatenate([b_idx, u_idx])               # destination nodes
    deg = jnp.zeros((n,), jnp.float32).at[col].add(1.0)
    deg_inv_sqrt = jnp.where(deg > 0.0,
                             jnp.where(deg > 0.0, deg, 1.0) ** -0.5, 0.0)
    norm = deg_inv_sqrt[row] * deg_inv_sqrt[col]
    # out.index_add_(0, col, x[row] * norm)  ==  (adj @ x) with adj[col,row] += norm
    adj = jnp.zeros((n_pad, n_pad), jnp.float32).at[col, row].add(norm)
    return adj


# ---------------------------------------------------------------------------
# Full forward
# ---------------------------------------------------------------------------
def user_book_gnn_forward(params, user_x, book_x, rates_edges, implicit_edges,
                          num_layers, *, compute_dtype=jnp.bfloat16,
                          force_per_layer=False):
    """UserBookGNN forward (lightgcn path). Returns (user_emb, book_emb)."""
    num_users, user_dim = user_x.shape
    num_books, book_dim = book_x.shape
    hidden = params["user_w_t"].shape[1]
    n = num_users + num_books

    itm = jnp.dtype(compute_dtype).itemsize
    budget = _vmem_budget_bytes()
    n_pad, tm, tk = _prop_tiling(n, itm, budget)
    h_pad = _round_up(hidden, 128)
    f_in = user_dim + book_dim + 2             # +2 indicator cols carry the biases
    f_pad = _round_up(f_in, 128)

    # ---- fused projection operands (padded, lane-dense) ----------------------
    x_all = jnp.zeros((n_pad, f_pad), jnp.float32)
    x_all = x_all.at[:num_users, :user_dim].set(user_x)
    x_all = x_all.at[num_users:n, user_dim:user_dim + book_dim].set(book_x)
    x_all = x_all.at[:num_users, user_dim + book_dim].set(1.0)        # user bias
    x_all = x_all.at[num_users:n, user_dim + book_dim + 1].set(1.0)   # book bias

    w_all = jnp.zeros((f_pad, h_pad), jnp.float32)
    w_all = w_all.at[:user_dim, :hidden].set(params["user_w_t"])
    w_all = w_all.at[user_dim:user_dim + book_dim, :hidden].set(params["book_w_t"])
    w_all = w_all.at[user_dim + book_dim, :hidden].set(params["user_b"])
    w_all = w_all.at[user_dim + book_dim + 1, :hidden].set(params["book_b"])

    x0_f32, x0_lo = fused_projection_pallas(
        x_all.astype(compute_dtype), w_all.astype(compute_dtype),
        tm=tm, lo_dtype=compute_dtype, vmem_limit=budget)

    if num_layers == 0:
        mean = x0_f32
    else:
        u_idx = jnp.concatenate([rates_edges[0], implicit_edges[0]])
        b_idx = jnp.concatenate([rates_edges[1], implicit_edges[1]])
        adj = build_lightgcn_adjacency(u_idx, b_idx, num_users, num_books,
                                       n_pad).astype(compute_dtype)

        use_fused = (not force_per_layer
                     and _fused_vmem_bytes(n_pad, h_pad, tm, tk, itm) <= budget)
        if use_fused:
            mean = fused_lightgcn_pallas(x0_f32, x0_lo, adj,
                                         num_layers=num_layers, tm=tm, tk=tk,
                                         vmem_limit=budget)
        else:
            cur_resident = _layer_vmem_bytes(n_pad, h_pad, tm, tk, itm,
                                             True) <= budget
            inv = 1.0 / float(num_layers + 1)
            cur, run_sum = x0_lo, x0_f32
            for layer in range(num_layers):
                last = layer == num_layers - 1
                outs = lightgcn_layer_pallas(
                    adj, cur, run_sum, scale=inv if last else 1.0,
                    tm=tm, tk=tk, last=last, cur_resident=cur_resident,
                    vmem_limit=budget)
                if last:
                    run_sum = outs
                else:
                    cur, run_sum = outs
            mean = run_sum

    return mean[:num_users, :hidden], mean[num_users:n, :hidden]


# ---------------------------------------------------------------------------
# Pure-JAX reference (mirrors the PyTorch ops op-by-op) for verification
# ---------------------------------------------------------------------------
def reference_forward(params, user_x, book_x, rates_edges, implicit_edges,
                      num_layers):
    num_users = user_x.shape[0]
    user0 = user_x @ params["user_w_t"] + params["user_b"]
    book0 = book_x @ params["book_w_t"] + params["book_b"]

    u_idx = jnp.concatenate([rates_edges[0], implicit_edges[0]])
    b_idx = jnp.concatenate([rates_edges[1], implicit_edges[1]])
    n = user0.shape[0] + book0.shape[0]
    row = jnp.concatenate([u_idx, b_idx + num_users])
    col = jnp.concatenate([b_idx, u_idx])
    deg = jnp.zeros((n,), jnp.float32).at[col].add(1.0)
    dis = jnp.where(deg > 0.0, jnp.where(deg > 0.0, deg, 1.0) ** -0.5, 0.0)
    norm = dis[row] * dis[col]

    cur = jnp.concatenate([user0, book0], axis=0)
    embeds = [cur]
    for _ in range(num_layers):
        cur = jnp.zeros_like(cur).at[col].add(cur[row] * norm[:, None])
        embeds.append(cur)
    mean_embed = jnp.stack(embeds).mean(axis=0)
    return mean_embed[:num_users], mean_embed[num_users:]


# ---------------------------------------------------------------------------
if __name__ == "__main__":
    NUM_USERS, NUM_BOOKS = 12, 20
    USER_DIM, BOOK_DIM, HIDDEN = 16, 24, 32
    NUM_LAYERS = 2
    E_RATES, E_IMPL = 30, 18

    key = jax.random.PRNGKey(0)
    keys = jax.random.split(key, 8)

    user_x = jax.random.normal(keys[0], (NUM_USERS, USER_DIM), jnp.float32)
    book_x = jax.random.normal(keys[1], (NUM_BOOKS, BOOK_DIM), jnp.float32)

    rates_edges = jnp.stack([
        jax.random.randint(keys[2], (E_RATES,), 0, NUM_USERS),
        jax.random.randint(keys[3], (E_RATES,), 0, NUM_BOOKS),
    ])
    implicit_edges = jnp.stack([
        jax.random.randint(keys[4], (E_IMPL,), 0, NUM_USERS),
        jax.random.randint(keys[5], (E_IMPL,), 0, NUM_BOOKS),
    ])

    # Deterministic parameter init (nn.Linear-shaped weights, stored transposed).
    params = {
        "user_w_t": 0.1 * jax.random.normal(keys[6], (USER_DIM, HIDDEN), jnp.float32),
        "user_b": jnp.linspace(-0.1, 0.1, HIDDEN, dtype=jnp.float32),
        "book_w_t": 0.1 * jax.random.normal(keys[7], (BOOK_DIM, HIDDEN), jnp.float32),
        "book_b": jnp.linspace(0.1, -0.1, HIDDEN, dtype=jnp.float32),
    }

    ref_user, ref_book = reference_forward(
        params, user_x, book_x, rates_edges, implicit_edges, NUM_LAYERS)
    ref_user = np.asarray(ref_user)
    ref_book = np.asarray(ref_book)

    def run_and_check(compute_dtype, force_per_layer, rtol, atol):
        fn = jax.jit(functools.partial(
            user_book_gnn_forward, num_layers=NUM_LAYERS,
            compute_dtype=compute_dtype, force_per_layer=force_per_layer))
        u, b = fn(params, user_x, book_x, rates_edges, implicit_edges)
        jax.block_until_ready(u)
        jax.block_until_ready(b)
        assert u.shape == (NUM_USERS, HIDDEN)
        assert b.shape == (NUM_BOOKS, HIDDEN)
        np.testing.assert_allclose(np.asarray(u), ref_user, rtol=rtol, atol=atol)
        np.testing.assert_allclose(np.asarray(b), ref_book, rtol=rtol, atol=atol)

    # Fused-layers path (primary): bf16 fast path + f32 exactness check.
    run_and_check(jnp.bfloat16, False, 5e-2, 5e-2)
    run_and_check(jnp.float32, False, 5e-3, 5e-3)
    # Per-layer fallback path (resident cur, aliased running sum, no dead cur
    # write on the final layer).
    run_and_check(jnp.bfloat16, True, 5e-2, 5e-2)
    run_and_check(jnp.float32, True, 5e-3, 5e-3)

    print("KERNEL_OK")
</pallas_src>

<mosaic_0001>
module attributes {stable_mosaic.version = 11 : i64} {
  func.func private @main(%arg0: i32) attributes {dimension_semantics = [#tpu.dimension_semantics<core_parallel>], iteration_bounds = array<i64: 2>, tpu.core_type = #tpu.core_type<sc_scalar_subcore>, window_params = []} {
    return
  }
}

module attributes {stable_mosaic.version = 11 : i64} {
  func.func private @main(%arg0: i32) attributes {dimension_semantics = [#tpu.dimension_semantics<core_parallel>], iteration_bounds = array<i64: 2>, tpu.core_type = #tpu.core_type<sc_scalar_subcore>, window_params = []} {
    return
  }
}

module attributes {stable_mosaic.version = 11 : i64} {
  func.func @_fused_proj_kernel(%arg0: i32, %arg1: memref<128x128xbf16, #tpu.memory_space<vmem>>, %arg2: memref<128x128xbf16, #tpu.memory_space<vmem>>, %arg3: memref<128x128xf32, #tpu.memory_space<vmem>>, %arg4: memref<128x128xbf16, #tpu.memory_space<vmem>>) attributes {dimension_semantics = [#tpu.dimension_semantics<parallel>], iteration_bounds = array<i64: 1>, scalar_prefetch = 0 : i64, scratch_operands = 0 : i64, tpu.core_type = #tpu.core_type<tc>, window_params = [{transform_indices = @transform_0, window_bounds = array<i64: 128, 128>}, {pipeline_mode = #tpu.pipeline_mode<synchronous>, transform_indices = @transform_1, window_bounds = array<i64: 128, 128>}, {transform_indices = @transform_2, window_bounds = array<i64: 128, 128>}, {transform_indices = @transform_3, window_bounds = array<i64: 128, 128>}]} {
    %c0 = arith.constant 0 : index
    %c0_0 = arith.constant 0 : index
    %0 = vector.load %arg1[%c0, %c0_0] : memref<128x128xbf16, #tpu.memory_space<vmem>>, vector<128x128xbf16>
    %c0_1 = arith.constant 0 : index
    %c0_2 = arith.constant 0 : index
    %1 = vector.load %arg2[%c0_1, %c0_2] : memref<128x128xbf16, #tpu.memory_space<vmem>>, vector<128x128xbf16>
    %cst = arith.constant dense<0.000000e+00> : vector<128x128xf32>
    %2 = tpu.matmul %0, %1, %cst {dimension_numbers = #tpu.dot_dimension_numbers<[1], [0], [0], [1], [0, 0, 1, 1], [], []>} : vector<128x128xbf16>, vector<128x128xbf16>, vector<128x128xf32> -> vector<128x128xf32>
    %c0_3 = arith.constant 0 : index
    %c0_4 = arith.constant 0 : index
    %3 = vector.load %arg3[%c0_3, %c0_4] : memref<128x128xf32, #tpu.memory_space<vmem>>, vector<128x128xf32>
    tpu.vector_store %arg3[%c0_3, %c0_4], %2 {strides = array<i32>} : memref<128x128xf32, #tpu.memory_space<vmem>>, vector<128x128xf32>,
    %4 = arith.truncf %2 : vector<128x128xf32> to vector<128x128xbf16>
    %c0_5 = arith.constant 0 : index
    %c0_6 = arith.constant 0 : index
    %5 = vector.load %arg4[%c0_5, %c0_6] : memref<128x128xbf16, #tpu.memory_space<vmem>>, vector<128x128xbf16>
    tpu.vector_store %arg4[%c0_5, %c0_6], %4 {strides = array<i32>} : memref<128x128xbf16, #tpu.memory_space<vmem>>, vector<128x128xbf16>,
    return
  }
  func.func @transform_0(%arg0: i32) -> (i32, i32) {
    %c0_i32 = arith.constant 0 : i32
    %c0_i32_0 = arith.constant 0 : i32
    return %arg0, %c0_i32 : i32, i32
  }
  func.func @transform_1(%arg0: i32) -> (i32, i32) {
    %c0_i32 = arith.constant 0 : i32
    %c0_i32_0 = arith.constant 0 : i32
    %c0_i32_1 = arith.constant 0 : i32
    return %c0_i32, %c0_i32_0 : i32, i32
  }
  func.func @transform_2(%arg0: i32) -> (i32, i32) {
    %c0_i32 = arith.constant 0 : i32
    %c0_i32_0 = arith.constant 0 : i32
    return %arg0, %c0_i32 : i32, i32
  }
  func.func @transform_3(%arg0: i32) -> (i32, i32) {
    %c0_i32 = arith.constant 0 : i32
    %c0_i32_0 = arith.constant 0 : i32
    return %arg0, %c0_i32 : i32, i32
  }
}

module attributes {stable_mosaic.version = 11 : i64} {
  func.func @_fused_lightgcn_kernel(%arg0: i32, %arg1: i32, %arg2: i32, %arg3: memref<128x128xf32, #tpu.memory_space<vmem>>, %arg4: memref<128x128xbf16, #tpu.memory_space<vmem>>, %arg5: memref<128x128xbf16, #tpu.memory_space<vmem>>, %arg6: memref<128x128xf32, #tpu.memory_space<vmem>>, %arg7: memref<256x128xbf16, #tpu.memory_space<vmem>>, %arg8: memref<128x128xf32, #tpu.memory_space<vmem>>, %arg9: memref<128x128xf32, #tpu.memory_space<vmem>>) attributes {dimension_semantics = [#tpu.dimension_semantics<arbitrary>, #tpu.dimension_semantics<arbitrary>, #tpu.dimension_semantics<arbitrary>], iteration_bounds = array<i64: 2, 1, 1>, scalar_prefetch = 0 : i64, scratch_operands = 3 : i64, tpu.core_type = #tpu.core_type<tc>, window_params = [{transform_indices = @transform_0, window_bounds = array<i64: 128, 128>}, {pipeline_mode = #tpu.pipeline_mode<synchronous>, transform_indices = @transform_1, window_bounds = array<i64: 128, 128>}, {transform_indices = @transform_2, window_bounds = array<i64: 128, 128>}, {transform_indices = @transform_3, window_bounds = array<i64: 128, 128>}]} {
    %c1_i32 = arith.constant 1 : i32
    %0 = arith.andi %arg0, %c1_i32 : i32
    %c0_i32 = arith.constant 0 : i32
    %1 = arith.cmpi eq, %arg2, %c0_i32 : i32
    %2 = arith.extui %1 : i1 to i32
    %c0_i32_0 = arith.constant 0 : i32
    %3 = arith.cmpi ne, %2, %c0_i32_0 : i32
    scf.if %3 {
      %cst = arith.constant 0.000000e+00 : f32
      %22 = vector.broadcast %cst : f32 to vector<128x128xf32>
      %c0 = arith.constant 0 : index
      %c0_11 = arith.constant 0 : index
      %23 = vector.load %arg9[%c0, %c0_11] : memref<128x128xf32, #tpu.memory_space<vmem>>, vector<128x128xf32>
      tpu.vector_store %arg9[%c0, %c0_11], %22 {strides = array<i32>} : memref<128x128xf32, #tpu.memory_space<vmem>>, vector<128x128xf32>,
    } else {
    }
    %c128_i32 = arith.constant 128 : i32
    %4 = arith.muli %arg2, %c128_i32 : i32
    %5 = tpu.assume_multiple %4, 128 : i32
    %c0_i32_1 = arith.constant 0 : i32
    %6 = arith.cmpi eq, %arg0, %c0_i32_1 : i32
    %7 = arith.extui %6 : i1 to i32
    %c0_i32_2 = arith.constant 0 : i32
    %8 = arith.cmpi ne, %7, %c0_i32_2 : i32
    scf.if %8 {
      %22 = arith.index_cast %5 : i32 to index
      %c0 = arith.constant 0 : index
      %23 = vector.load %arg4[%22, %c0] : memref<128x128xbf16, #tpu.memory_space<vmem>>, vector<128x128xbf16>
      %c0_11 = arith.constant 0 : index
      %c0_12 = arith.constant 0 : index
      %24 = vector.load %arg9[%c0_11, %c0_12] : memref<128x128xf32, #tpu.memory_space<vmem>>, vector<128x128xf32>
      %c0_13 = arith.constant 0 : index
      %c0_14 = arith.constant 0 : index
      %25 = vector.load %arg5[%c0_13, %c0_14] : memref<128x128xbf16, #tpu.memory_space<vmem>>, vector<128x128xbf16>
      %cst = arith.constant dense<0.000000e+00> : vector<128x128xf32>
      %26 = tpu.matmul %25, %23, %cst {dimension_numbers = #tpu.dot_dimension_numbers<[1], [0], [0], [1], [0, 0, 1, 1], [], []>} : vector<128x128xbf16>, vector<128x128xbf16>, vector<128x128xf32> -> vector<128x128xf32>
      %27 = arith.addf %24, %26 : vector<128x128xf32>
      %c0_15 = arith.constant 0 : index
      %c0_16 = arith.constant 0 : index
      %28 = vector.load %arg9[%c0_15, %c0_16] : memref<128x128xf32, #tpu.memory_space<vmem>>, vector<128x128xf32>
      tpu.vector_store %arg9[%c0_15, %c0_16], %27 {strides = array<i32>} : memref<128x128xf32, #tpu.memory_space<vmem>>, vector<128x128xf32>,
    } else {
    }
    %c0_i32_3 = arith.constant 0 : i32
    %9 = arith.cmpi sgt, %arg0, %c0_i32_3 : i32
    %c1_i32_4 = arith.constant 1 : i32
    %10 = arith.cmpi eq, %0, %c1_i32_4 : i32
    %11 = arith.andi %9, %10 : i1
    %12 = arith.extui %11 : i1 to i32
    %c0_i32_5 = arith.constant 0 : i32
    %13 = arith.cmpi ne, %12, %c0_i32_5 : i32
    scf.if %13 {
      %22 = arith.index_cast %5 : i32 to index
      %c0 = arith.constant 0 : index
      %23 = vector.load %arg7[%22, %c0] : memref<256x128xbf16, #tpu.memory_space<vmem>>, vector<128x128xbf16>
      %c0_11 = arith.constant 0 : index
      %c0_12 = arith.constant 0 : index
      %24 = vector.load %arg9[%c0_11, %c0_12] : memref<128x128xf32, #tpu.memory_space<vmem>>, vector<128x128xf32>
      %c0_13 = arith.constant 0 : index
      %c0_14 = arith.constant 0 : index
      %25 = vector.load %arg5[%c0_13, %c0_14] : memref<128x128xbf16, #tpu.memory_space<vmem>>, vector<128x128xbf16>
      %cst = arith.constant dense<0.000000e+00> : vector<128x128xf32>
      %26 = tpu.matmul %25, %23, %cst {dimension_numbers = #tpu.dot_dimension_numbers<[1], [0], [0], [1], [0, 0, 1, 1], [], []>} : vector<128x128xbf16>, vector<128x128xbf16>, vector<128x128xf32> -> vector<128x128xf32>
      %27 = arith.addf %24, %26 : vector<128x128xf32>
      %c0_15 = arith.constant 0 : index
      %c0_16 = arith.constant 0 : index
      %28 = vector.load %arg9[%c0_15, %c0_16] : memref<128x128xf32, #tpu.memory_space<vmem>>, vector<128x128xf32>
      tpu.vector_store %arg9[%c0_15, %c0_16], %27 {strides = array<i32>} : memref<128x128xf32, #tpu.memory_space<vmem>>, vector<128x128xf32>,
    } else {
    }
    %c0_i32_6 = arith.constant 0 : i32
    %14 = arith.cmpi sgt, %arg0, %c0_i32_6 : i32
    %c0_i32_7 = arith.constant 0 : i32
    %15 = arith.cmpi eq, %0, %c0_i32_7 : i32
    %16 = arith.andi %14, %15 : i1
    %17 = arith.extui %16 : i1 to i32
    %c0_i32_8 = arith.constant 0 : i32
    %18 = arith.cmpi ne, %17, %c0_i32_8 : i32
    scf.if %18 {
      %c128_i32_11 = arith.constant 128 : i32
      %22 = arith.addi %c128_i32_11, %5 : i32
      %23 = arith.index_cast %22 : i32 to index
      %c0 = arith.constant 0 : index
      %24 = vector.load %arg7[%23, %c0] : memref<256x128xbf16, #tpu.memory_space<vmem>>, vector<128x128xbf16>
      %c0_12 = arith.constant 0 : index
      %c0_13 = arith.constant 0 : index
      %25 = vector.load %arg9[%c0_12, %c0_13] : memref<128x128xf32, #tpu.memory_space<vmem>>, vector<128x128xf32>
      %c0_14 = arith.constant 0 : index
      %c0_15 = arith.constant 0 : index
      %26 = vector.load %arg5[%c0_14, %c0_15] : memref<128x128xbf16, #tpu.memory_space<vmem>>, vector<128x128xbf16>
      %cst = arith.constant dense<0.000000e+00> : vector<128x128xf32>
      %27 = tpu.matmul %26, %24, %cst {dimension_numbers = #tpu.dot_dimension_numbers<[1], [0], [0], [1], [0, 0, 1, 1], [], []>} : vector<128x128xbf16>, vector<128x128xbf16>, vector<128x128xf32> -> vector<128x128xf32>
      %28 = arith.addf %25, %27 : vector<128x128xf32>
      %c0_16 = arith.constant 0 : index
      %c0_17 = arith.constant 0 : index
      %29 = vector.load %arg9[%c0_16, %c0_17] : memref<128x128xf32, #tpu.memory_space<vmem>>, vector<128x128xf32>
      tpu.vector_store %arg9[%c0_16, %c0_17], %28 {strides = array<i32>} : memref<128x128xf32, #tpu.memory_space<vmem>>, vector<128x128xf32>,
    } else {
    }
    %c0_i32_9 = arith.constant 0 : i32
    %19 = arith.cmpi eq, %arg2, %c0_i32_9 : i32
    %20 = arith.extui %19 : i1 to i32
    %c0_i32_10 = arith.constant 0 : i32
    %21 = arith.cmpi ne, %20, %c0_i32_10 : i32
    scf.if %21 {
      %c128_i32_11 = arith.constant 128 : i32
      %22 = arith.muli %arg1, %c128_i32_11 : i32
      %23 = tpu.assume_multiple %22, 128 : i32
      %c0 = arith.constant 0 : index
      %c0_12 = arith.constant 0 : index
      %24 = vector.load %arg9[%c0, %c0_12] : memref<128x128xf32, #tpu.memory_space<vmem>>, vector<128x128xf32>
      %c0_i32_13 = arith.constant 0 : i32
      %25 = arith.cmpi eq, %arg0, %c0_i32_13 : i32
      %c0_14 = arith.constant 0 : index
      %c0_15 = arith.constant 0 : index
      %26 = vector.load %arg3[%c0_14, %c0_15] : memref<128x128xf32, #tpu.memory_space<vmem>>, vector<128x128xf32>
      %27 = arith.index_cast %23 : i32 to index
      %c0_16 = arith.constant 0 : index
      %28 = vector.load %arg8[%27, %c0_16] : memref<128x128xf32, #tpu.memory_space<vmem>>, vector<128x128xf32>
      %29 = arith.select %25, %26, %28 : vector<128x128xf32>
      %30 = arith.addf %29, %24 : vector<128x128xf32>
      %31 = arith.index_cast %23 : i32 to index
      %c0_17 = arith.constant 0 : index
      %32 = vector.load %arg8[%31, %c0_17] : memref<128x128xf32, #tpu.memory_space<vmem>>, vector<128x128xf32>
      tpu.vector_store %arg8[%31, %c0_17], %30 {strides = array<i32>} : memref<128x128xf32, #tpu.memory_space<vmem>>, vector<128x128xf32>,
      %c1_i32_18 = arith.constant 1 : i32
      %33 = arith.cmpi slt, %arg0, %c1_i32_18 : i32
      %34 = arith.extui %33 : i1 to i32
      %c0_i32_19 = arith.constant 0 : i32
      %35 = arith.cmpi ne, %34, %c0_i32_19 : i32
      scf.if %35 {
        %39 = arith.truncf %24 : vector<128x128xf32> to vector<128x128xbf16>
        %c0_i32_22 = arith.constant 0 : i32
        %40 = arith.cmpi eq, %0, %c0_i32_22 : i32
        %41 = arith.extui %40 : i1 to i32
        %c0_i32_23 = arith.constant 0 : i32
        %42 = arith.cmpi ne, %41, %c0_i32_23 : i32
        scf.if %42 {
          %46 = arith.index_cast %23 : i32 to index
          %c0_26 = arith.constant 0 : index
          %47 = vector.load %arg7[%46, %c0_26] : memref<256x128xbf16, #tpu.memory_space<vmem>>, vector<128x128xbf16>
          tpu.vector_store %arg7[%46, %c0_26], %39 {strides = array<i32>} : memref<256x128xbf16, #tpu.memory_space<vmem>>, vector<128x128xbf16>,
        } else {
        }
        %c1_i32_24 = arith.constant 1 : i32
        %43 = arith.cmpi eq, %0, %c1_i32_24 : i32
        %44 = arith.extui %43 : i1 to i32
        %c0_i32_25 = arith.constant 0 : i32
        %45 = arith.cmpi ne, %44, %c0_i32_25 : i32
        scf.if %45 {
          %c128_i32_26 = arith.constant 128 : i32
          %46 = arith.addi %c128_i32_26, %23 : i32
          %47 = arith.index_cast %46 : i32 to index
          %c0_27 = arith.constant 0 : index
          %48 = vector.load %arg7[%47, %c0_27] : memref<256x128xbf16, #tpu.memory_space<vmem>>, vector<128x128xbf16>
          tpu.vector_store %arg7[%47, %c0_27], %39 {strides = array<i32>} : memref<256x128xbf16, #tpu.memory_space<vmem>>, vector<128x128xbf16>,
        } else {
        }
      } else {
      }
      %c1_i32_20 = arith.constant 1 : i32
      %36 = arith.cmpi eq, %arg0, %c1_i32_20 : i32
      %37 = arith.extui %36 : i1 to i32
      %c0_i32_21 = arith.constant 0 : i32
      %38 = arith.cmpi ne, %37, %c0_i32_21 : i32
      scf.if %38 {
        %cst = arith.constant 0.333333343 : f32
        %39 = vector.broadcast %cst : f32 to vector<128x128xf32>
        %40 = arith.mulf %30, %39 : vector<128x128xf32>
        %c0_22 = arith.constant 0 : index
        %c0_23 = arith.constant 0 : index
        %41 = vector.load %arg6[%c0_22, %c0_23] : memref<128x128xf32, #tpu.memory_space<vmem>>, vector<128x128xf32>
        tpu.vector_store %arg6[%c0_22, %c0_23], %40 {strides = array<i32>} : memref<128x128xf32, #tpu.memory_space<vmem>>, vector<128x128xf32>,
      } else {
      }
    } else {
    }
    return
  }
  func.func @transform_0(%arg0: i32, %arg1: i32, %arg2: i32) -> (i32, i32) {
    %c0_i32 = arith.constant 0 : i32
    %c0_i32_0 = arith.constant 0 : i32
    return %arg1, %c0_i32 : i32, i32
  }
  func.func @transform_1(%arg0: i32, %arg1: i32, %arg2: i32) -> (i32, i32) {
    %c0_i32 = arith.constant 0 : i32
    %c0_i32_0 = arith.constant 0 : i32
    %c0_i32_1 = arith.constant 0 : i32
    return %c0_i32, %c0_i32_0 : i32, i32
  }
  func.func @transform_2(%arg0: i32, %arg1: i32, %arg2: i32) -> (i32, i32) {
    %c0_i32 = arith.constant 0 : i32
    return %arg1, %arg2 : i32, i32
  }
  func.func @transform_3(%arg0: i32, %arg1: i32, %arg2: i32) -> (i32, i32) {
    %c0_i32 = arith.constant 0 : i32
    %c0_i32_0 = arith.constant 0 : i32
    return %arg1, %c0_i32 : i32, i32
  }
}

</mosaic_0001>

<llo_original>
// kernel: mul.1
$region0: #{mul.1}
  #allocation0 [shape = 's32[1]{0}', space=sflag, size = 0x4, scoped, tag = 'scoped memory for mul.1']
  %s0 = inlined_call_operand.vmem [shape: f32[96], index: 0, kind: input, shape index: {}]
  %s1 = inlined_call_operand.vmem [shape: f32[96], index: 1, kind: input, shape index: {}]
  %s2 = inlined_call_operand.vmem [shape: f32[96], index: 2, kind: output, shape index: {}]
  %v3 = vld [vmem:[%s0] sm:$0x1]
  %v4 = vld [vmem:[%s1] sm:$0x1]
  %5 = xla_tuple %v3, %v4
  %6 = xla_tuple %5
  %v7 = vmul.f32 %v3, %v4
  %8 = xla_tuple %v7
  %9 = vst [vmem:[%s2] sm:$0x1] %v7

// kernel: user_book_gnn_forward.2
$region0: #{user_book_gnn_forward.2}
  #allocation0 [shape = 'u32[]', space=smem, size = 0x4, offset = 0x4, fixed_abs, tag = 'smem constant byte address 0x4 - core index']
  #allocation1 [shape = 'u32[144,128]{1,0:T(1,128)}', space=vmem, size = 0x12000, scoped, tag = 'internal scratch']
  %s0 = inlined_call_operand.vmem [shape: bf16[128,128], index: 0, kind: input, shape index: {}]
  %s1 = inlined_call_operand.vmem [shape: bf16[128,128], index: 1, kind: input, shape index: {}]
  %s2 = inlined_call_operand.vmem [shape: f32[128,128], index: 2, kind: output, shape index: {0}]
  %s3 = inlined_call_operand.vmem [shape: bf16[128,128], index: 3, kind: output, shape index: {1}]
  %4 = xla_tuple %s2, %s3
  %s5 = sld [smem:[#allocation0]]
  $region26: #{user_book_gnn_forward.2} parent=0
    _
  %s7 = ssub.s32 1, %s5
  %s8 = scalar_select 0, %s7, %s5
  // Predicated region
  $region2: #{user_book_gnn_forward.2} parent=0 // pred_check
    _
  $region3: #{user_book_gnn_forward.2} parent=0 // pred_check_branch
    %10 = sbr.rel (0) target = $region5
  $region4: #{user_book_gnn_forward.2} parent=0 // pred_region
    _
  $region5: #{user_book_gnn_forward.2} parent=0 // pred_fallthru
    _
  // Predicated region
  $region6: #{user_book_gnn_forward.2} parent=0 // pred_check
    _
  $region7: #{user_book_gnn_forward.2} parent=0 // pred_check_branch
    %12 = sbr.rel (0) target = $region9
  $region8: #{user_book_gnn_forward.2} parent=0 // pred_region
    _
  $region9: #{user_book_gnn_forward.2} parent=0 // pred_fallthru
    _
  %v14 = vld [vmem:[%s0] sm:$0xf]
  %v15 = vld [vmem:[%s0 + $0x4] sm:$0xf]
  %v16 = vld [vmem:[%s0 + $0x8] sm:$0xf]
  %v17 = vld [vmem:[%s0 + $0xc] sm:$0xf]
  %v18 = vld [vmem:[%s0 + $0x10] sm:$0xf]
  %v19 = vld [vmem:[%s0 + $0x14] sm:$0xf]
  %v20 = vld [vmem:[%s0 + $0x18] sm:$0xf]
  %v21 = vld [vmem:[%s0 + $0x1c] sm:$0xf]
  %v22 = vld [vmem:[%s0 + $0x20] sm:$0xf]
  %v23 = vld [vmem:[%s0 + $0x24] sm:$0xf]
  %v24 = vld [vmem:[%s0 + $0x28] sm:$0xf]
  %v25 = vld [vmem:[%s0 + $0x2c] sm:$0xf]
  %v26 = vld [vmem:[%s0 + $0x30] sm:$0xf]
  %v27 = vld [vmem:[%s0 + $0x34] sm:$0xf]
  %v28 = vld [vmem:[%s0 + $0x38] sm:$0xf]
  %v29 = vld [vmem:[%s0 + $0x3c] sm:$0xf]
  %v30 = vld [vmem:[%s1] sm:$0xf]
  %v31 = vld [vmem:[%s1 + $0x4] sm:$0xf]
  %v32 = vld [vmem:[%s1 + $0x8] sm:$0xf]
  %v33 = vld [vmem:[%s1 + $0xc] sm:$0xf]
  %v34 = vld [vmem:[%s1 + $0x10] sm:$0xf]
  %v35 = vld [vmem:[%s1 + $0x14] sm:$0xf]
  %v36 = vld [vmem:[%s1 + $0x18] sm:$0xf]
  %v37 = vld [vmem:[%s1 + $0x1c] sm:$0xf]
  %v38 = vld [vmem:[%s1 + $0x20] sm:$0xf]
  %v39 = vld [vmem:[%s1 + $0x24] sm:$0xf]
  %v40 = vld [vmem:[%s1 + $0x28] sm:$0xf]
  %v41 = vld [vmem:[%s1 + $0x2c] sm:$0xf]
  %v42 = vld [vmem:[%s1 + $0x30] sm:$0xf]
  %v43 = vld [vmem:[%s1 + $0x34] sm:$0xf]
  %v44 = vld [vmem:[%s1 + $0x38] sm:$0xf]
  %v45 = vld [vmem:[%s1 + $0x3c] sm:$0xf]
  %v62 = vunpack.c.l.b16 %v14
  %v63 = vunpack.c.l.b16 %v15
  %v64 = vunpack.c.l.b16 %v16
  %v65 = vunpack.c.l.b16 %v17
  %v66 = vunpack.c.l.b16 %v18
  %v67 = vunpack.c.l.b16 %v19
  %v68 = vunpack.c.l.b16 %v20
  %v69 = vunpack.c.l.b16 %v21
  %v70 = vunpack.c.l.b16 %v22
  %v71 = vunpack.c.l.b16 %v23
  %v72 = vunpack.c.l.b16 %v24
  %v73 = vunpack.c.l.b16 %v25
  %v74 = vunpack.c.l.b16 %v26
  %v75 = vunpack.c.l.b16 %v27
  %v76 = vunpack.c.l.b16 %v28
  %v77 = vunpack.c.l.b16 %v29
  %v78 = vpack.c.b16 %v63, %v62
  %v79 = vpack.c.b16 %v65, %v64
  %v80 = vpack.c.b16 %v67, %v66
  %v81 = vpack.c.b16 %v69, %v68
  %v82 = vpack.c.b16 %v71, %v70
  %v83 = vpack.c.b16 %v73, %v72
  %v84 = vpack.c.b16 %v75, %v74
  %v85 = vpack.c.b16 %v77, %v76
  %v110 = vunpack.c.l.b16 %v30
  %v111 = vunpack.c.l.b16 %v31
  %v112 = vunpack.c.l.b16 %v32
  %v113 = vunpack.c.l.b16 %v33
  %v114 = vunpack.c.l.b16 %v34
  %v115 = vunpack.c.l.b16 %v35
  %v116 = vunpack.c.l.b16 %v36
  %v117 = vunpack.c.l.b16 %v37
  %v118 = vunpack.c.l.b16 %v38
  %v119 = vunpack.c.l.b16 %v39
  %v120 = vunpack.c.l.b16 %v40
  %v121 = vunpack.c.l.b16 %v41
  %v122 = vunpack.c.l.b16 %v42
  %v123 = vunpack.c.l.b16 %v43
  %v124 = vunpack.c.l.b16 %v44
  %v125 = vunpack.c.l.b16 %v45
  %v126 = vpack.c.b16 %v111, %v110
  %v127 = vpack.c.b16 %v113, %v112
  %v128 = vpack.c.b16 %v115, %v114
  %v129 = vpack.c.b16 %v117, %v116
  %v130 = vpack.c.b16 %v119, %v118
  %v131 = vpack.c.b16 %v121, %v120
  %v132 = vpack.c.b16 %v123, %v122
  %v133 = vpack.c.b16 %v125, %v124
  %142 = vmatprep.subr.bf16.mxu0 0
  %143 = vmatpush1.bf16.msra.mxu0 %v126
  %144 = vmatprep.subr.bf16.mxu0 0
  %145 = vmatpush1.bf16.msra.mxu0 %v127
  %146 = vmatprep.subr.bf16.mxu0 0
  %147 = vmatpush1.bf16.msra.mxu0 %v128
  %148 = vmatprep.subr.bf16.mxu0 0
  %149 = vmatpush1.bf16.msra.mxu0 %v129
  %150 = vmatprep.subr.bf16.mxu0 0
  %151 = vmatpush1.bf16.msra.mxu0 %v130
  %152 = vmatprep.subr.bf16.mxu0 0
  %153 = vmatpush1.bf16.msra.mxu0 %v131
  %154 = vmatprep.subr.bf16.mxu0 0
  %155 = vmatpush1.bf16.msra.mxu0 %v132
  %156 = vmatprep.subr.bf16.mxu0 0
  %157 = vmatpush1.bf16.msra.mxu0 %v133
  %158 = vmatprep.subr.bf16.mxu0 0
  %159 = vmatpush1.bf16.msra.mxu0 0
  %160 = vmatprep.subr.bf16.mxu0 0
  %161 = vmatpush1.bf16.msra.mxu0 0
  %162 = vmatprep.subr.bf16.mxu0 0
  %163 = vmatpush1.bf16.msra.mxu0 0
  %164 = vmatprep.subr.bf16.mxu0 0
  %165 = vmatpush1.bf16.msra.mxu0 0
  %166 = vmatprep.subr.bf16.mxu0 0
  %167 = vmatpush1.bf16.msra.mxu0 0
  %168 = vmatprep.subr.bf16.mxu0 0
  %169 = vmatpush1.bf16.msra.mxu0 0
  %170 = vmatprep.subr.bf16.mxu0 0
  %171 = vmatpush1.bf16.msra.mxu0 0
  %172 = vmatprep.subr.bf16.mxu0 0
  %173 = vmatpush1.bf16.msra.mxu0 0
  %174 = vmatprep.mubr.bf16.mxu0 0
  %175 = vmatmul.mubr.bf16.gmra.mrb[0].mxu0 %v78
  %v176 = vpop.f32.mrb[0].mxu0
  %v177 = vadd.f32 0.0, %v176
  %v178 = vpop.f32.mrb[0].mxu0
  %v179 = vpop.f32.mrb[0].mxu0
  %v180 = vadd.f32 0.0, %v179
  %v181 = vpop.f32.mrb[0].mxu0
  %182 = vmatprep.mubr.bf16.mxu0 0
  %183 = vmatmul.mubr.bf16.gmra.mrb[0].mxu0 %v79
  %v184 = vpop.f32.mrb[0].mxu0
  %v185 = vadd.f32 0.0, %v184
  %v186 = vpop.f32.mrb[0].mxu0
  %v187 = vpop.f32.mrb[0].mxu0
  %v188 = vadd.f32 0.0, %v187
  %v189 = vpop.f32.mrb[0].mxu0
  %190 = vmatprep.mubr.bf16.mxu0 0
  %191 = vmatmul.mubr.bf16.gmra.mrb[0].mxu0 %v80
  %v192 = vpop.f32.mrb[0].mxu0
  %v193 = vadd.f32 0.0, %v192
  %v194 = vpop.f32.mrb[0].mxu0
  %v195 = vpop.f32.mrb[0].mxu0
  %v196 = vadd.f32 0.0, %v195
  %v197 = vpop.f32.mrb[0].mxu0
  %198 = vmatprep.mubr.bf16.mxu0 0
  %199 = vmatmul.mubr.bf16.gmra.mrb[0].mxu0 %v81
  %v200 = vpop.f32.mrb[0].mxu0
  %v201 = vadd.f32 0.0, %v200
  %v202 = vpop.f32.mrb[0].mxu0
  %v203 = vpop.f32.mrb[0].mxu0
  %v204 = vadd.f32 0.0, %v203
  %v205 = vpop.f32.mrb[0].mxu0
  %206 = vmatprep.mubr.bf16.mxu0 0
  %207 = vmatmul.mubr.bf16.gmra.mrb[0].mxu0 %v82
  %v208 = vpop.f32.mrb[0].mxu0
  %v209 = vadd.f32 0.0, %v208
  %v210 = vpop.f32.mrb[0].mxu0
  %v211 = vpop.f32.mrb[0].mxu0
  %v212 = vadd.f32 0.0, %v211
  %v213 = vpop.f32.mrb[0].mxu0
  %214 = vmatprep.mubr.bf16.mxu0 0
  %215 = vmatmul.mubr.bf16.gmra.mrb[0].mxu0 %v83
  %v216 = vpop.f32.mrb[0].mxu0
  %v217 = vadd.f32 0.0, %v216
  %v218 = vpop.f32.mrb[0].mxu0
  %v219 = vpop.f32.mrb[0].mxu0
  %v220 = vadd.f32 0.0, %v219
  %v221 = vpop.f32.mrb[0].mxu0
  %222 = vmatprep.mubr.bf16.mxu0 0
  %223 = vmatmul.mubr.bf16.gmra.mrb[0].mxu0 %v84
  %v224 = vpop.f32.mrb[0].mxu0
  %v225 = vadd.f32 0.0, %v224
  %v226 = vpop.f32.mrb[0].mxu0
  %v227 = vpop.f32.mrb[0].mxu0
  %v228 = vadd.f32 0.0, %v227
  %v229 = vpop.f32.mrb[0].mxu0
  %230 = vmatprep.mubr.bf16.mxu0 0
  %231 = vmatmul.mubr.bf16.gmra.mrb[0].mxu0 %v85
  %v232 = vpop.f32.mrb[0].mxu0
  %v233 = vadd.f32 0.0, %v232
  %v234 = vpop.f32.mrb[0].mxu0
  %v235 = vpop.f32.mrb[0].mxu0
  %v236 = vadd.f32 0.0, %v235
  %v237 = vpop.f32.mrb[0].mxu0
  %238 = vdwg.mxu0
  %239 = vst [vmem:[%s2] sm:$0xff] %v177
  %240 = vst [vmem:[%s2 + $0x8] sm:$0xff] %v180
  %241 = vst [vmem:[%s2 + $0x10] sm:$0xff] %v185
  %242 = vst [vmem:[%s2 + $0x18] sm:$0xff] %v188
  %243 = vst [vmem:[%s2 + $0x20] sm:$0xff] %v193
  %244 = vst [vmem:[%s2 + $0x28] sm:$0xff] %v196
  %245 = vst [vmem:[%s2 + $0x30] sm:$0xff] %v201
  %246 = vst [vmem:[%s2 + $0x38] sm:$0xff] %v204
  %247 = vst [vmem:[%s2 + $0x40] sm:$0xff] %v209
  %248 = vst [vmem:[%s2 + $0x48] sm:$0xff] %v212
  %249 = vst [vmem:[%s2 + $0x50] sm:$0xff] %v217
  %250 = vst [vmem:[%s2 + $0x58] sm:$0xff] %v220
  %251 = vst [vmem:[%s2 + $0x60] sm:$0xff] %v225
  %252 = vst [vmem:[%s2 + $0x68] sm:$0xff] %v228
  %253 = vst [vmem:[%s2 + $0x70] sm:$0xff] %v233
  %254 = vst [vmem:[%s2 + $0x78] sm:$0xff] %v236
  %v255 = vpack.c.bf16 %v180, %v177
  %v256 = vpack.c.bf16 %v188, %v185
  %v257 = vpack.c.bf16 %v196, %v193
  %v258 = vpack.c.bf16 %v204, %v201
  %v259 = vpack.c.bf16 %v212, %v209
  %v260 = vpack.c.bf16 %v220, %v217
  %v261 = vpack.c.bf16 %v228, %v225
  %v262 = vpack.c.bf16 %v236, %v233
  %v271 = vunpack.c.l.b16 %v255
  %v272 = vunpack.c.h.b16 %v255
  %v273 = vunpack.c.l.b16 %v256
  %v274 = vunpack.c.h.b16 %v256
  %v275 = vunpack.c.l.b16 %v257
  %v276 = vunpack.c.h.b16 %v257
  %v277 = vunpack.c.l.b16 %v258
  %v278 = vunpack.c.h.b16 %v258
  %v279 = vunpack.c.l.b16 %v259
  %v280 = vunpack.c.h.b16 %v259
  %v281 = vunpack.c.l.b16 %v260
  %v282 = vunpack.c.h.b16 %v260
  %v283 = vunpack.c.l.b16 %v261
  %v284 = vunpack.c.h.b16 %v261
  %v285 = vunpack.c.l.b16 %v262
  %v286 = vunpack.c.h.b16 %v262
  %v287 = vpack.c.b16 %v271, %v271
  %v288 = vpack.c.b16 %v272, %v272
  %v289 = vpack.c.b16 %v273, %v273
  %v290 = vpack.c.b16 %v274, %v274
  %v291 = vpack.c.b16 %v275, %v275
  %v292 = vpack.c.b16 %v276, %v276
  %v293 = vpack.c.b16 %v277, %v277
  %v294 = vpack.c.b16 %v278, %v278
  %v295 = vpack.c.b16 %v279, %v279
  %v296 = vpack.c.b16 %v280, %v280
  %v297 = vpack.c.b16 %v281, %v281
  %v298 = vpack.c.b16 %v282, %v282
  %v299 = vpack.c.b16 %v283, %v283
  %v300 = vpack.c.b16 %v284, %v284
  %v301 = vpack.c.b16 %v285, %v285
  %v302 = vpack.c.b16 %v286, %v286
  %319 = vst [vmem:[%s3] sm:$0xf] %v287
  %320 = vst [vmem:[%s3 + $0x4] sm:$0xf] %v288
  %321 = vst [vmem:[%s3 + $0x8] sm:$0xf] %v289
  %322 = vst [vmem:[%s3 + $0xc] sm:$0xf] %v290
  %323 = vst [vmem:[%s3 + $0x10] sm:$0xf] %v291
  %324 = vst [vmem:[%s3 + $0x14] sm:$0xf] %v292
  %325 = vst [vmem:[%s3 + $0x18] sm:$0xf] %v293
  %326 = vst [vmem:[%s3 + $0x1c] sm:$0xf] %v294
  %327 = vst [vmem:[%s3 + $0x20] sm:$0xf] %v295
  %328 = vst [vmem:[%s3 + $0x24] sm:$0xf] %v296
  %329 = vst [vmem:[%s3 + $0x28] sm:$0xf] %v297
  %330 = vst [vmem:[%s3 + $0x2c] sm:$0xf] %v298
  %331 = vst [vmem:[%s3 + $0x30] sm:$0xf] %v299
  %332 = vst [vmem:[%s3 + $0x34] sm:$0xf] %v300
  %333 = vst [vmem:[%s3 + $0x38] sm:$0xf] %v301
  %334 = vst [vmem:[%s3 + $0x3c] sm:$0xf] %v302
  // Predicated region
  $region10: #{user_book_gnn_forward.2} parent=0 // pred_check
    _
  $region11: #{user_book_gnn_forward.2} parent=0 // pred_check_branch
    %336 = sbr.rel (0) target = $region13
  $region12: #{user_book_gnn_forward.2} parent=0 // pred_region
    _
  $region13: #{user_book_gnn_forward.2} parent=0 // pred_fallthru
    _
  // Predicated region
  $region14: #{user_book_gnn_forward.2} parent=0 // pred_check
    _
  $region15: #{user_book_gnn_forward.2} parent=0 // pred_check_branch
    %338 = sbr.rel (0) target = $region17
  $region16: #{user_book_gnn_forward.2} parent=0 // pred_region
    _
  $region17: #{user_book_gnn_forward.2} parent=0 // pred_fallthru
    _
  // Predicated region
  $region18: #{user_book_gnn_forward.2} parent=0 // pred_check
    _
  $region19: #{user_book_gnn_forward.2} parent=0 // pred_check_branch
    %340 = sbr.rel (0) target = $region21
  $region20: #{user_book_gnn_forward.2} parent=0 // pred_region
    _
  $region21: #{user_book_gnn_forward.2} parent=0 // pred_fallthru
    _
  // Predicated region
  $region22: #{user_book_gnn_forward.2} parent=0 // pred_check
    _
  $region23: #{user_book_gnn_forward.2} parent=0 // pred_check_branch
    %342 = sbr.rel (0) target = $region25
  $region24: #{user_book_gnn_forward.2} parent=0 // pred_region
    _
  $region25: #{user_book_gnn_forward.2} parent=0 // pred_fallthru
    _

// kernel: user_book_gnn_forward.3
$region0: #{user_book_gnn_forward.3}
  #allocation0 [shape = 'u32[]', space=smem, size = 0x4, offset = 0x4, fixed_abs, tag = 'smem constant byte address 0x4 - core index']
  #allocation1 [shape = 'u32[144,128]{1,0:T(1,128)}', space=vmem, size = 0x12000, scoped, tag = 'internal scratch']
  #allocation2 [shape = 'bf16[256,128]{1,0:T(16,128)(2,1)}', space=vmem, size = 0x10000, scoped, tag = 'scratch operand']
  #allocation3 [shape = 'f32[128,128]{1,0:T(8,128)}', space=vmem, size = 0x10000, scoped, tag = 'scratch operand']
  #allocation4 [shape = 'f32[128,128]{1,0:T(8,128)}', space=vmem, size = 0x10000, scoped, tag = 'scratch operand']
  %s0 = inlined_call_operand.vmem [shape: f32[128,128], index: 0, kind: input, shape index: {}]
  %s1 = inlined_call_operand.vmem [shape: bf16[128,128], index: 1, kind: input, shape index: {}]
  %s2 = inlined_call_operand.vmem [shape: bf16[128,128], index: 2, kind: input, shape index: {}]
  %s3 = inlined_call_operand.vmem [shape: f32[128,128], index: 3, kind: output, shape index: {}]
  %s4 = sld [smem:[#allocation0]]
  $region81: #{user_book_gnn_forward.3} parent=0
    _
  %s6 = ssub.s32 1, %s4
  %s7 = scalar_select 0, %s6, %s4
  loop: start=0, step=1, limit=4
  $region2: #{user_book_gnn_forward.3} parent=0 // loop_pre_header
    _
  $region3: #{user_book_gnn_forward.3} parent=0 // loop_header
    %s9 = sphi 0, %s13
    %p10 = scmp.ge.s32.totalorder %s9, 4
    %s16 = sphi 0, %s35
    %s17 = sphi 0, %s31
    %s18 = sphi 0, %s27
    %s19 = sphi 0, %s16
    %s20 = sphi 0, %s17
    %s21 = sphi 0, %s18
    %s22 = sphi 0, %s19
    %s23 = sphi 0, %s20
    %s24 = sphi 0, %s21
    %s38 = sphi 0, %s40
    %s41 = sphi 0, %s38
    %s42 = sphi 0, %s41
    %s58 = sphi 0, %s42
    %s62 = sphi 0, %s62
    %s64 = sphi 0, %s62
    %s65 = sphi 0, %s64
    %s79 = sphi 0, %s65
    %s87 = sphi 0, %s89
    %s90 = sphi 0, %s87
    %s91 = sphi 0, %s90
    %s107 = sphi 0, %s91
    %s113 = sphi 0, %s115
    %s116 = sphi 0, %s113
    %s117 = sphi 0, %s116
    %s133 = sphi 0, %s117
  $region4: #{user_book_gnn_forward.3} parent=0 // loop_header_branch
    %12 = sbr.rel (%p10) target = $region8
  $region5: #{user_book_gnn_forward.3} parent=0 // loop_body
    %s14 = ssub.s32 %s9, 1
    %s15 = ssub.s32 %s9, 2
    %s25 = sadd.s32 1, %s18
    %p26 = scmp.ge.s32.totalorder %s25, 1
    %s27 = scalar_select %p26, 0, %s25
    %s28 = sadd.s32 1, %s17
    %s29 = scalar_select %p26, %s28, %s17
    %p30 = scmp.ge.s32.totalorder %s29, 1
    %s31 = scalar_select %p30, 0, %s29
    %s32 = sadd.s32 1, %s16
    %s33 = scalar_select %p30, %s32, %s16
    %p34 = scmp.ge.s32.totalorder %s33, 2
    %s35 = scalar_select %p34, 0, %s33
    %s36 = ssub.s32 %s17, %s31
    %p37 = scmp.eq.s32.totalorder %s36, 0
    %s39 = sadd.s32 %s38, 1
    %s40 = scalar_select %p37, %s38, %s39
    %p43 = pneg %p37
    %p44 = scmp.eq.s32.totalorder %s9, 1
    %p45 = por %p43, %p44
    %p46 = scmp.ne.s32.totalorder %s38, %s41
    %p47 = scmp.eq.s32.totalorder %s9, 0
    %p48 = por %p46, %p47
    %p49 = scmp.ne.s32.totalorder %s38, %s41
    %p50 = scmp.eq.s32.totalorder %s14, 1
    %p51 = por %p49, %p50
    %p52 = scmp.ne.s32.totalorder %s41, %s42
    %p53 = scmp.eq.s32.totalorder %s14, 0
    %p54 = por %p52, %p53
    %p55 = scmp.ne.s32.totalorder %s41, %s42
    %p56 = scmp.eq.s32.totalorder %s15, 1
    %p57 = por %p55, %p56
    %p59 = scmp.ne.s32.totalorder %s42, %s58
    %p60 = scmp.eq.s32.totalorder %s15, 0
    %p61 = por %p59, %p60
    %s63 = sadd.s32 %s62, 1
    %p66 = scmp.eq.s32.totalorder %s9, 1
    %p67 = scmp.ne.s32.totalorder %s62, %s64
    %p68 = scmp.eq.s32.totalorder %s9, 0
    %p69 = por %p67, %p68
    %p70 = scmp.ne.s32.totalorder %s62, %s64
    %p71 = scmp.eq.s32.totalorder %s14, 1
    %p72 = por %p70, %p71
    %p73 = scmp.ne.s32.totalorder %s64, %s65
    %p74 = scmp.eq.s32.totalorder %s14, 0
    %p75 = por %p73, %p74
    %p76 = scmp.ne.s32.totalorder %s64, %s65
    %p77 = scmp.eq.s32.totalorder %s15, 1
    %p78 = por %p76, %p77
    %p80 = scmp.ne.s32.totalorder %s65, %s79
    %p81 = scmp.eq.s32.totalorder %s15, 0
    %p82 = por %p80, %p81
    %s83 = ssub.s32 %s17, %s31
    %s84 = ssub.s32 %s18, %s27
    %s85 = sor.u32 %s83, %s84
    %p86 = scmp.eq.s32.totalorder %s85, 0
    %s88 = sadd.s32 %s87, 1
    %s89 = scalar_select %p86, %s87, %s88
    %p92 = pneg %p86
    %p93 = scmp.eq.s32.totalorder %s9, 1
    %p94 = por %p92, %p93
    %p95 = scmp.ne.s32.totalorder %s87, %s90
    %p96 = scmp.eq.s32.totalorder %s9, 0
    %p97 = por %p95, %p96
    %p98 = scmp.ne.s32.totalorder %s87, %s90
    %p99 = scmp.eq.s32.totalorder %s14, 1
    %p100 = por %p98, %p99
    %p101 = scmp.ne.s32.totalorder %s90, %s91
    %p102 = scmp.eq.s32.totalorder %s14, 0
    %p103 = por %p101, %p102
    %p104 = scmp.ne.s32.totalorder %s90, %s91
    %p105 = scmp.eq.s32.totalorder %s15, 1
    %p106 = por %p104, %p105
    %p108 = scmp.ne.s32.totalorder %s91, %s107
    %p109 = scmp.eq.s32.totalorder %s15, 0
    %p110 = por %p108, %p109
    %s111 = ssub.s32 %s17, %s31
    %p112 = scmp.eq.s32.totalorder %s111, 0
    %s114 = sadd.s32 %s113, 1
    %s115 = scalar_select %p112, %s113, %s114
    %p118 = pneg %p112
    %p119 = scmp.eq.s32.totalorder %s9, 1
    %p120 = por %p118, %p119
    %p121 = scmp.ne.s32.totalorder %s113, %s116
    %p122 = scmp.eq.s32.totalorder %s9, 0
    %p123 = por %p121, %p122
    %p124 = scmp.ne.s32.totalorder %s113, %s116
    %p125 = scmp.eq.s32.totalorder %s14, 1
    %p126 = por %p124, %p125
    %p127 = scmp.ne.s32.totalorder %s116, %s117
    %p128 = scmp.eq.s32.totalorder %s14, 0
    %p129 = por %p127, %p128
    %p130 = scmp.ne.s32.totalorder %s116, %s117
    %p131 = scmp.eq.s32.totalorder %s15, 1
    %p132 = por %p130, %p131
    %p134 = scmp.ne.s32.totalorder %s117, %s133
    %p135 = scmp.eq.s32.totalorder %s15, 0
    %p136 = por %p134, %p135
    %p137 = scmp.le.s32.totalorder 1, %s9
    %p138 = scmp.lt.s32.totalorder %s9, 3
    %p139 = pnand %p137, %p138
    %p140 = pneg %p139
    // Predicated region
    $region9: #{user_book_gnn_forward.3} parent=5 // pred_check
      _
    $region10: #{user_book_gnn_forward.3} parent=5 // pred_check_branch
      %142 = sbr.rel (%p139) target = $region12
    $region11: #{user_book_gnn_forward.3} parent=5 // pred_region
      %s143 = ssub.s32 %s9, 1
      // Predicated region
      $region13: #{user_book_gnn_forward.3} parent=11 // pred_check
        %p144 = pneg %p54
      $region14: #{user_book_gnn_forward.3} parent=11 // pred_check_branch
        %146 = sbr.rel (%p144) target = $region16
      $region15: #{user_book_gnn_forward.3} parent=11 // pred_region
        %s147 = smul.u32 16, %s20
        %p148 = scmp.lt.s32.totalorder %s147, 15
        %s149 = scalar_select %p148, %s147, 15
        %s150 = smul.addr %s149, 8
        %s151 = scalar_lea.vmem %s0, %s150
        %s152 = smul.u32 16, %s20
      $region16: #{user_book_gnn_forward.3} parent=11 // pred_fallthru
        _
      // Predicated region
      $region17: #{user_book_gnn_forward.3} parent=11 // pred_check
        %p153 = pneg %p75
      $region18: #{user_book_gnn_forward.3} parent=11 // pred_check_branch
        %155 = sbr.rel (%p153) target = $region20
      $region19: #{user_book_gnn_forward.3} parent=11 // pred_region
        _
      $region20: #{user_book_gnn_forward.3} parent=11 // pred_fallthru
        _
      // Predicated region
      $region21: #{user_book_gnn_forward.3} parent=11 // pred_check
        %p156 = pneg %p103
      $region22: #{user_book_gnn_forward.3} parent=11 // pred_check_branch
        %158 = sbr.rel (%p156) target = $region24
      $region23: #{user_book_gnn_forward.3} parent=11 // pred_region
        %s159 = smul.u32 16, %s20
        %p160 = scmp.lt.s32.totalorder %s159, 15
        %s161 = scalar_select %p160, %s159, 15
        %p162 = scmp.lt.s32.totalorder %s21, 0
        %s163 = scalar_select %p162, %s21, 0
        %s164 = sadd.s32 %s163, %s161
        %s165 = smul.addr %s164, 4
        %s166 = scalar_lea.vmem %s2, %s165
        %s167 = smul.u32 16, %s20
      $region24: #{user_book_gnn_forward.3} parent=11 // pred_fallthru
        _
    $region12: #{user_book_gnn_forward.3} parent=5 // pred_fallthru
      _
    %p168 = scmp.lt.s32.totalorder %s9, 2
    // Predicated region
    $region25: #{user_book_gnn_forward.3} parent=5 // pred_check
      %p169 = pneg %p168
    $region26: #{user_book_gnn_forward.3} parent=5 // pred_check_branch
      %171 = sbr.rel (%p169) target = $region28
    $region27: #{user_book_gnn_forward.3} parent=5 // pred_region
      _
    $region28: #{user_book_gnn_forward.3} parent=5 // pred_fallthru
      _
    %p172 = scmp.le.s32.totalorder 1, %s9
    %p173 = scmp.lt.s32.totalorder %s9, 3
    %p174 = pnand %p172, %p173
    %p175 = pneg %p174
    // Predicated region
    $region29: #{user_book_gnn_forward.3} parent=5 // pred_check
      _
    $region30: #{user_book_gnn_forward.3} parent=5 // pred_check_branch
      %177 = sbr.rel (%p174) target = $region32
    $region31: #{user_book_gnn_forward.3} parent=5 // pred_region
      %s178 = ssub.s32 %s9, 1
      %s179 = smul.u32 16, %s20
      %p180 = scmp.lt.s32.totalorder %s179, 15
      %s181 = scalar_select %p180, %s179, 15
      %s182 = smul.addr %s181, 8
      %s183 = scalar_lea.vmem %s0, %s182
      %p184 = pneg %p54
      %p185 = pneg %p51
      %p186 = pneg %p75
      %p187 = pneg %p72
      %s188 = smul.u32 16, %s20
      %p189 = scmp.lt.s32.totalorder %s188, 15
      %s190 = scalar_select %p189, %s188, 15
      %p191 = scmp.lt.s32.totalorder %s21, 0
      %s192 = scalar_select %p191, %s21, 0
      %s193 = sadd.s32 %s192, %s190
      %s194 = smul.addr %s193, 4
      %s195 = scalar_lea.vmem %s2, %s194
      %p196 = pneg %p103
      %p197 = pneg %p100
      %p198 = pneg %p129
      %p199 = pneg %p126
      %s200 = smul.u32 16, %s20
      %p201 = scmp.lt.s32.totalorder %s200, 15
      %s202 = scalar_select %p201, %s200, 15
      %s203 = smul.addr %s202, 8
      %s204 = scalar_lea.vmem %s3, %s203
      %s205 = smul.u32 16, %s20
      %p206 = scmp.lt.s32.totalorder %s205, 15
      %s207 = scalar_select %p206, %s205, 15
      %s208 = smul.addr %s207, 8
      %s209 = scalar_lea.vmem %s0, %s208
      %s210 = smul.u32 16, %s20
      %s211 = smul.u32 16, %s20
      %p212 = scmp.lt.s32.totalorder %s211, 15
      %s213 = scalar_select %p212, %s211, 15
      %p214 = scmp.lt.s32.totalorder %s21, 0
      %s215 = scalar_select %p214, %s21, 0
      %s216 = sadd.s32 %s215, %s213
      %s217 = smul.addr %s216, 4
      %s218 = scalar_lea.vmem %s2, %s217
      %s219 = smul.u32 16, %s20
      %s220 = smul.u32 16, %s20
      %p221 = scmp.lt.s32.totalorder %s220, 15
      %s222 = scalar_select %p221, %s220, 15
      %s223 = smul.addr %s222, 8
      %s224 = scalar_lea.vmem %s3, %s223
      %s225 = smul.u32 16, %s20
      %s227 = sand.u32 %s19, 1
      %p228 = scmp.eq.s32.totalorder %s21, 0
      // Predicated region
      $region33: #{user_book_gnn_forward.3} parent=31 // pred_check
        %p229 = pneg %p228
      $region34: #{user_book_gnn_forward.3} parent=31 // pred_check_branch
        %231 = sbr.rel (%p229) target = $region36
      $region35: #{user_book_gnn_forward.3} parent=31 // pred_region
        %232 = vst [vmem:[#allocation4] sm:$0xff] 0.0
        %233 = vst [vmem:[#allocation4 + $0x8] sm:$0xff] 0.0
        %234 = vst [vmem:[#allocation4 + $0x10] sm:$0xff] 0.0
        %235 = vst [vmem:[#allocation4 + $0x18] sm:$0xff] 0.0
        %236 = vst [vmem:[#allocation4 + $0x20] sm:$0xff] 0.0
        %237 = vst [vmem:[#allocation4 + $0x28] sm:$0xff] 0.0
        %238 = vst [vmem:[#allocation4 + $0x30] sm:$0xff] 0.0
        %239 = vst [vmem:[#allocation4 + $0x38] sm:$0xff] 0.0
        %240 = vst [vmem:[#allocation4 + $0x40] sm:$0xff] 0.0
        %241 = vst [vmem:[#allocation4 + $0x48] sm:$0xff] 0.0
        %242 = vst [vmem:[#allocation4 + $0x50] sm:$0xff] 0.0
        %243 = vst [vmem:[#allocation4 + $0x58] sm:$0xff] 0.0
        %244 = vst [vmem:[#allocation4 + $0x60] sm:$0xff] 0.0
        %245 = vst [vmem:[#allocation4 + $0x68] sm:$0xff] 0.0
        %246 = vst [vmem:[#allocation4 + $0x70] sm:$0xff] 0.0
        %247 = vst [vmem:[#allocation4 + $0x78] sm:$0xff] 0.0
      $region36: #{user_book_gnn_forward.3} parent=31 // pred_fallthru
        _
      %s248 = smul.u32 %s21, 128
      %p249 = scmp.eq.s32.totalorder %s19, 0
      // Predicated region
      $region37: #{user_book_gnn_forward.3} parent=31 // pred_check
        %p250 = pneg %p249
      $region38: #{user_book_gnn_forward.3} parent=31 // pred_check_branch
        %252 = sbr.rel (%p250) target = $region40
      $region39: #{user_book_gnn_forward.3} parent=31 // pred_region
        %s253 = sshra.s32 %s248, 3
        %s254 = sand.u32 %s248, 7
        %s255 = smul.addr %s253, 4
        %s256 = scalar_lea.vmem %s1, %s255
        %v257 = vld [vmem:[%s256] sm:$0xf]
        %v258 = vld [vmem:[%s256 + $0x4] sm:$0xf]
        %v259 = vld [vmem:[%s256 + $0x8] sm:$0xf]
        %v260 = vld [vmem:[%s256 + $0xc] sm:$0xf]
        %v261 = vld [vmem:[%s256 + $0x10] sm:$0xf]
        %v262 = vld [vmem:[%s256 + $0x14] sm:$0xf]
        %v263 = vld [vmem:[%s256 + $0x18] sm:$0xf]
        %v264 = vld [vmem:[%s256 + $0x1c] sm:$0xf]
        %v265 = vld [vmem:[%s256 + $0x20] sm:$0xf]
        %v266 = vld [vmem:[%s256 + $0x24] sm:$0xf]
        %v267 = vld [vmem:[%s256 + $0x28] sm:$0xf]
        %v268 = vld [vmem:[%s256 + $0x2c] sm:$0xf]
        %v269 = vld [vmem:[%s256 + $0x30] sm:$0xf]
        %v270 = vld [vmem:[%s256 + $0x34] sm:$0xf]
        %v271 = vld [vmem:[%s256 + $0x38] sm:$0xf]
        %v272 = vld [vmem:[%s256 + $0x3c] sm:$0xf]
        %v273 = vld [vmem:[#allocation4] sm:$0xff]
        %v274 = vld [vmem:[#allocation4 + $0x8] sm:$0xff]
        %v275 = vld [vmem:[#allocation4 + $0x10] sm:$0xff]
        %v276 = vld [vmem:[#allocation4 + $0x18] sm:$0xff]
        %v277 = vld [vmem:[#allocation4 + $0x20] sm:$0xff]
        %v278 = vld [vmem:[#allocation4 + $0x28] sm:$0xff]
        %v279 = vld [vmem:[#allocation4 + $0x30] sm:$0xff]
        %v280 = vld [vmem:[#allocation4 + $0x38] sm:$0xff]
        %v281 = vld [vmem:[#allocation4 + $0x40] sm:$0xff]
        %v282 = vld [vmem:[#allocation4 + $0x48] sm:$0xff]
        %v283 = vld [vmem:[#allocation4 + $0x50] sm:$0xff]
        %v284 = vld [vmem:[#allocation4 + $0x58] sm:$0xff]
        %v285 = vld [vmem:[#allocation4 + $0x60] sm:$0xff]
        %v286 = vld [vmem:[#allocation4 + $0x68] sm:$0xff]
        %v287 = vld [vmem:[#allocation4 + $0x70] sm:$0xff]
        %v288 = vld [vmem:[#allocation4 + $0x78] sm:$0xff]
        %v289 = vld [vmem:[%s218] sm:$0xf]
        %v290 = vld [vmem:[%s218 + $0x4] sm:$0xf]
        %v291 = vld [vmem:[%s218 + $0x8] sm:$0xf]
        %v292 = vld [vmem:[%s218 + $0xc] sm:$0xf]
        %v293 = vld [vmem:[%s218 + $0x10] sm:$0xf]
        %v294 = vld [vmem:[%s218 + $0x14] sm:$0xf]
        %v295 = vld [vmem:[%s218 + $0x18] sm:$0xf]
        %v296 = vld [vmem:[%s218 + $0x1c] sm:$0xf]
        %v297 = vld [vmem:[%s218 + $0x20] sm:$0xf]
        %v298 = vld [vmem:[%s218 + $0x24] sm:$0xf]
        %v299 = vld [vmem:[%s218 + $0x28] sm:$0xf]
        %v300 = vld [vmem:[%s218 + $0x2c] sm:$0xf]
        %v301 = vld [vmem:[%s218 + $0x30] sm:$0xf]
        %v302 = vld [vmem:[%s218 + $0x34] sm:$0xf]
        %v303 = vld [vmem:[%s218 + $0x38] sm:$0xf]
        %v304 = vld [vmem:[%s218 + $0x3c] sm:$0xf]
        %v321 = vunpack.c.l.b16 %v289
        %v322 = vunpack.c.l.b16 %v290
        %v323 = vunpack.c.l.b16 %v291
        %v324 = vunpack.c.l.b16 %v292
        %v325 = vunpack.c.l.b16 %v293
        %v326 = vunpack.c.l.b16 %v294
        %v327 = vunpack.c.l.b16 %v295
        %v328 = vunpack.c.l.b16 %v296
        %v329 = vunpack.c.l.b16 %v297
        %v330 = vunpack.c.l.b16 %v298
        %v331 = vunpack.c.l.b16 %v299
        %v332 = vunpack.c.l.b16 %v300
        %v333 = vunpack.c.l.b16 %v301
        %v334 = vunpack.c.l.b16 %v302
        %v335 = vunpack.c.l.b16 %v303
        %v336 = vunpack.c.l.b16 %v304
        %v337 = vpack.c.b16 %v322, %v321
        %v338 = vpack.c.b16 %v324, %v323
        %v339 = vpack.c.b16 %v326, %v325
        %v340 = vpack.c.b16 %v328, %v327
        %v341 = vpack.c.b16 %v330, %v329
        %v342 = vpack.c.b16 %v332, %v331
        %v343 = vpack.c.b16 %v334, %v333
        %v344 = vpack.c.b16 %v336, %v335
        %v369 = vunpack.c.l.b16 %v257
        %v370 = vunpack.c.l.b16 %v258
        %v371 = vunpack.c.l.b16 %v259
        %v372 = vunpack.c.l.b16 %v260
        %v373 = vunpack.c.l.b16 %v261
        %v374 = vunpack.c.l.b16 %v262
        %v375 = vunpack.c.l.b16 %v263
        %v376 = vunpack.c.l.b16 %v264
        %v377 = vunpack.c.l.b16 %v265
        %v378 = vunpack.c.l.b16 %v266
        %v379 = vunpack.c.l.b16 %v267
        %v380 = vunpack.c.l.b16 %v268
        %v381 = vunpack.c.l.b16 %v269
        %v382 = vunpack.c.l.b16 %v270
        %v383 = vunpack.c.l.b16 %v271
        %v384 = vunpack.c.l.b16 %v272
        %v385 = vpack.c.b16 %v370, %v369
        %v386 = vpack.c.b16 %v372, %v371
        %v387 = vpack.c.b16 %v374, %v373
        %v388 = vpack.c.b16 %v376, %v375
        %v389 = vpack.c.b16 %v378, %v377
        %v390 = vpack.c.b16 %v380, %v379
        %v391 = vpack.c.b16 %v382, %v381
        %v392 = vpack.c.b16 %v384, %v383
        %401 = vmatprep.subr.bf16.mxu0 0
        %402 = vmatpush1.bf16.msra.mxu0 %v385
        %403 = vmatprep.subr.bf16.mxu0 0
        %404 = vmatpush1.bf16.msra.mxu0 %v386
        %405 = vmatprep.subr.bf16.mxu0 0
        %406 = vmatpush1.bf16.msra.mxu0 %v387
        %407 = vmatprep.subr.bf16.mxu0 0
        %408 = vmatpush1.bf16.msra.mxu0 %v388
        %409 = vmatprep.subr.bf16.mxu0 0
        %410 = vmatpush1.bf16.msra.mxu0 %v389
        %411 = vmatprep.subr.bf16.mxu0 0
        %412 = vmatpush1.bf16.msra.mxu0 %v390
        %413 = vmatprep.subr.bf16.mxu0 0
        %414 = vmatpush1.bf16.msra.mxu0 %v391
        %415 = vmatprep.subr.bf16.mxu0 0
        %416 = vmatpush1.bf16.msra.mxu0 %v392
        %417 = vmatprep.subr.bf16.mxu0 0
        %418 = vmatpush1.bf16.msra.mxu0 0
        %419 = vmatprep.subr.bf16.mxu0 0
        %420 = vmatpush1.bf16.msra.mxu0 0
        %421 = vmatprep.subr.bf16.mxu0 0
        %422 = vmatpush1.bf16.msra.mxu0 0
        %423 = vmatprep.subr.bf16.mxu0 0
        %424 = vmatpush1.bf16.msra.mxu0 0
        %425 = vmatprep.subr.bf16.mxu0 0
        %426 = vmatpush1.bf16.msra.mxu0 0
        %427 = vmatprep.subr.bf16.mxu0 0
        %428 = vmatpush1.bf16.msra.mxu0 0
        %429 = vmatprep.subr.bf16.mxu0 0
        %430 = vmatpush1.bf16.msra.mxu0 0
        %431 = vmatprep.subr.bf16.mxu0 0
        %432 = vmatpush1.bf16.msra.mxu0 0
        %433 = vmatprep.mubr.bf16.mxu0 0
        %434 = vmatmul.mubr.bf16.gmra.mrb[0].mxu0 %v337
        %v435 = vpop.f32.mrb[0].mxu0
        %v436 = vadd.f32 0.0, %v435
        %v437 = vpop.f32.mrb[0].mxu0
        %v438 = vpop.f32.mrb[0].mxu0
        %v439 = vadd.f32 0.0, %v438
        %v440 = vpop.f32.mrb[0].mxu0
        %441 = vmatprep.mubr.bf16.mxu0 0
        %442 = vmatmul.mubr.bf16.gmra.mrb[0].mxu0 %v338
        %v443 = vpop.f32.mrb[0].mxu0
        %v444 = vadd.f32 0.0, %v443
        %v445 = vpop.f32.mrb[0].mxu0
        %v446 = vpop.f32.mrb[0].mxu0
        %v447 = vadd.f32 0.0, %v446
        %v448 = vpop.f32.mrb[0].mxu0
        %449 = vmatprep.mubr.bf16.mxu0 0
        %450 = vmatmul.mubr.bf16.gmra.mrb[0].mxu0 %v339
        %v451 = vpop.f32.mrb[0].mxu0
        %v452 = vadd.f32 0.0, %v451
        %v453 = vpop.f32.mrb[0].mxu0
        %v454 = vpop.f32.mrb[0].mxu0
        %v455 = vadd.f32 0.0, %v454
        %v456 = vpop.f32.mrb[0].mxu0
        %457 = vmatprep.mubr.bf16.mxu0 0
        %458 = vmatmul.mubr.bf16.gmra.mrb[0].mxu0 %v340
        %v459 = vpop.f32.mrb[0].mxu0
        %v460 = vadd.f32 0.0, %v459
        %v461 = vpop.f32.mrb[0].mxu0
        %v462 = vpop.f32.mrb[0].mxu0
        %v463 = vadd.f32 0.0, %v462
        %v464 = vpop.f32.mrb[0].mxu0
        %465 = vmatprep.mubr.bf16.mxu0 0
        %466 = vmatmul.mubr.bf16.gmra.mrb[0].mxu0 %v341
        %v467 = vpop.f32.mrb[0].mxu0
        %v468 = vadd.f32 0.0, %v467
        %v469 = vpop.f32.mrb[0].mxu0
        %v470 = vpop.f32.mrb[0].mxu0
        %v471 = vadd.f32 0.0, %v470
        %v472 = vpop.f32.mrb[0].mxu0
        %473 = vmatprep.mubr.bf16.mxu0 0
        %474 = vmatmul.mubr.bf16.gmra.mrb[0].mxu0 %v342
        %v475 = vpop.f32.mrb[0].mxu0
        %v476 = vadd.f32 0.0, %v475
        %v477 = vpop.f32.mrb[0].mxu0
        %v478 = vpop.f32.mrb[0].mxu0
        %v479 = vadd.f32 0.0, %v478
        %v480 = vpop.f32.mrb[0].mxu0
        %481 = vmatprep.mubr.bf16.mxu0 0
        %482 = vmatmul.mubr.bf16.gmra.mrb[0].mxu0 %v343
        %v483 = vpop.f32.mrb[0].mxu0
        %v484 = vadd.f32 0.0, %v483
        %v485 = vpop.f32.mrb[0].mxu0
        %v486 = vpop.f32.mrb[0].mxu0
        %v487 = vadd.f32 0.0, %v486
        %v488 = vpop.f32.mrb[0].mxu0
        %489 = vmatprep.mubr.bf16.mxu0 0
        %490 = vmatmul.mubr.bf16.gmra.mrb[0].mxu0 %v344
        %v491 = vpop.f32.mrb[0].mxu0
        %v492 = vadd.f32 0.0, %v491
        %v493 = vpop.f32.mrb[0].mxu0
        %v494 = vpop.f32.mrb[0].mxu0
        %v495 = vadd.f32 0.0, %v494
        %v496 = vpop.f32.mrb[0].mxu0
        %497 = vdwg.mxu0
        %v498 = vadd.f32 %v273, %v436
        %v499 = vadd.f32 %v274, %v439
        %v500 = vadd.f32 %v275, %v444
        %v501 = vadd.f32 %v276, %v447
        %v502 = vadd.f32 %v277, %v452
        %v503 = vadd.f32 %v278, %v455
        %v504 = vadd.f32 %v279, %v460
        %v505 = vadd.f32 %v280, %v463
        %v506 = vadd.f32 %v281, %v468
        %v507 = vadd.f32 %v282, %v471
        %v508 = vadd.f32 %v283, %v476
        %v509 = vadd.f32 %v284, %v479
        %v510 = vadd.f32 %v285, %v484
        %v511 = vadd.f32 %v286, %v487
        %v512 = vadd.f32 %v287, %v492
        %v513 = vadd.f32 %v288, %v495
        %514 = vst [vmem:[#allocation4] sm:$0xff] %v498
        %515 = vst [vmem:[#allocation4 + $0x8] sm:$0xff] %v499
        %516 = vst [vmem:[#allocation4 + $0x10] sm:$0xff] %v500
        %517 = vst [vmem:[#allocation4 + $0x18] sm:$0xff] %v501
        %518 = vst [vmem:[#allocation4 + $0x20] sm:$0xff] %v502
        %519 = vst [vmem:[#allocation4 + $0x28] sm:$0xff] %v503
        %520 = vst [vmem:[#allocation4 + $0x30] sm:$0xff] %v504
        %521 = vst [vmem:[#allocation4 + $0x38] sm:$0xff] %v505
        %522 = vst [vmem:[#allocation4 + $0x40] sm:$0xff] %v506
        %523 = vst [vmem:[#allocation4 + $0x48] sm:$0xff] %v507
        %524 = vst [vmem:[#allocation4 + $0x50] sm:$0xff] %v508
        %525 = vst [vmem:[#allocation4 + $0x58] sm:$0xff] %v509
        %526 = vst [vmem:[#allocation4 + $0x60] sm:$0xff] %v510
        %527 = vst [vmem:[#allocation4 + $0x68] sm:$0xff] %v511
        %528 = vst [vmem:[#allocation4 + $0x70] sm:$0xff] %v512
        %529 = vst [vmem:[#allocation4 + $0x78] sm:$0xff] %v513
      $region40: #{user_book_gnn_forward.3} parent=31 // pred_fallthru
        _
      %p530 = scmp.gt.s32.totalorder %s19, 0
      %p531 = scmp.eq.s32.totalorder %s227, 1
      %p532 = pnand %p530, %p531
      %p533 = pneg %p532
      // Predicated region
      $region41: #{user_book_gnn_forward.3} parent=31 // pred_check
        _
      $region42: #{user_book_gnn_forward.3} parent=31 // pred_check_branch
        %535 = sbr.rel (%p532) target = $region44
      $region43: #{user_book_gnn_forward.3} parent=31 // pred_region
        %s536 = sshra.s32 %s248, 4
        %s537 = sand.u32 %s248, 15
        %s538 = smul.addr %s536, 8
        %s539 = scalar_lea.vmem [#allocation2], %s538
        %v540 = vld [vmem:[%s539] sm:$0xff]
        %v541 = vld [vmem:[%s539 + $0x8] sm:$0xff]
        %v542 = vld [vmem:[%s539 + $0x10] sm:$0xff]
        %v543 = vld [vmem:[%s539 + $0x18] sm:$0xff]
        %v544 = vld [vmem:[%s539 + $0x20] sm:$0xff]
        %v545 = vld [vmem:[%s539 + $0x28] sm:$0xff]
        %v546 = vld [vmem:[%s539 + $0x30] sm:$0xff]
        %v547 = vld [vmem:[%s539 + $0x38] sm:$0xff]
        %v548 = vld [vmem:[#allocation4] sm:$0xff]
        %v549 = vld [vmem:[#allocation4 + $0x8] sm:$0xff]
        %v550 = vld [vmem:[#allocation4 + $0x10] sm:$0xff]
        %v551 = vld [vmem:[#allocation4 + $0x18] sm:$0xff]
        %v552 = vld [vmem:[#allocation4 + $0x20] sm:$0xff]
        %v553 = vld [vmem:[#allocation4 + $0x28] sm:$0xff]
        %v554 = vld [vmem:[#allocation4 + $0x30] sm:$0xff]
        %v555 = vld [vmem:[#allocation4 + $0x38] sm:$0xff]
        %v556 = vld [vmem:[#allocation4 + $0x40] sm:$0xff]
        %v557 = vld [vmem:[#allocation4 + $0x48] sm:$0xff]
        %v558 = vld [vmem:[#allocation4 + $0x50] sm:$0xff]
        %v559 = vld [vmem:[#allocation4 + $0x58] sm:$0xff]
        %v560 = vld [vmem:[#allocation4 + $0x60] sm:$0xff]
        %v561 = vld [vmem:[#allocation4 + $0x68] sm:$0xff]
        %v562 = vld [vmem:[#allocation4 + $0x70] sm:$0xff]
        %v563 = vld [vmem:[#allocation4 + $0x78] sm:$0xff]
        %v564 = vld [vmem:[%s218] sm:$0xf]
        %v565 = vld [vmem:[%s218 + $0x4] sm:$0xf]
        %v566 = vld [vmem:[%s218 + $0x8] sm:$0xf]
        %v567 = vld [vmem:[%s218 + $0xc] sm:$0xf]
        %v568 = vld [vmem:[%s218 + $0x10] sm:$0xf]
        %v569 = vld [vmem:[%s218 + $0x14] sm:$0xf]
        %v570 = vld [vmem:[%s218 + $0x18] sm:$0xf]
        %v571 = vld [vmem:[%s218 + $0x1c] sm:$0xf]
        %v572 = vld [vmem:[%s218 + $0x20] sm:$0xf]
        %v573 = vld [vmem:[%s218 + $0x24] sm:$0xf]
        %v574 = vld [vmem:[%s218 + $0x28] sm:$0xf]
        %v575 = vld [vmem:[%s218 + $0x2c] sm:$0xf]
        %v576 = vld [vmem:[%s218 + $0x30] sm:$0xf]
        %v577 = vld [vmem:[%s218 + $0x34] sm:$0xf]
        %v578 = vld [vmem:[%s218 + $0x38] sm:$0xf]
        %v579 = vld [vmem:[%s218 + $0x3c] sm:$0xf]
        %v596 = vunpack.c.l.b16 %v564
        %v597 = vunpack.c.l.b16 %v565
        %v598 = vunpack.c.l.b16 %v566
        %v599 = vunpack.c.l.b16 %v567
        %v600 = vunpack.c.l.b16 %v568
        %v601 = vunpack.c.l.b16 %v569
        %v602 = vunpack.c.l.b16 %v570
        %v603 = vunpack.c.l.b16 %v571
        %v604 = vunpack.c.l.b16 %v572
        %v605 = vunpack.c.l.b16 %v573
        %v606 = vunpack.c.l.b16 %v574
        %v607 = vunpack.c.l.b16 %v575
        %v608 = vunpack.c.l.b16 %v576
        %v609 = vunpack.c.l.b16 %v577
        %v610 = vunpack.c.l.b16 %v578
        %v611 = vunpack.c.l.b16 %v579
        %v612 = vpack.c.b16 %v597, %v596
        %v613 = vpack.c.b16 %v599, %v598
        %v614 = vpack.c.b16 %v601, %v600
        %v615 = vpack.c.b16 %v603, %v602
        %v616 = vpack.c.b16 %v605, %v604
        %v617 = vpack.c.b16 %v607, %v606
        %v618 = vpack.c.b16 %v609, %v608
        %v619 = vpack.c.b16 %v611, %v610
        %628 = vmatprep.subr.bf16.mxu0 0
        %629 = vmatpush1.bf16.msra.mxu0 %v540
        %630 = vmatprep.subr.bf16.mxu0 0
        %631 = vmatpush1.bf16.msra.mxu0 %v541
        %632 = vmatprep.subr.bf16.mxu0 0
        %633 = vmatpush1.bf16.msra.mxu0 %v542
        %634 = vmatprep.subr.bf16.mxu0 0
        %635 = vmatpush1.bf16.msra.mxu0 %v543
        %636 = vmatprep.subr.bf16.mxu0 0
        %637 = vmatpush1.bf16.msra.mxu0 %v544
        %638 = vmatprep.subr.bf16.mxu0 0
        %639 = vmatpush1.bf16.msra.mxu0 %v545
        %640 = vmatprep.subr.bf16.mxu0 0
        %641 = vmatpush1.bf16.msra.mxu0 %v546
        %642 = vmatprep.subr.bf16.mxu0 0
        %643 = vmatpush1.bf16.msra.mxu0 %v547
        %644 = vmatprep.subr.bf16.mxu0 0
        %645 = vmatpush1.bf16.msra.mxu0 0
        %646 = vmatprep.subr.bf16.mxu0 0
        %647 = vmatpush1.bf16.msra.mxu0 0
        %648 = vmatprep.subr.bf16.mxu0 0
        %649 = vmatpush1.bf16.msra.mxu0 0
        %650 = vmatprep.subr.bf16.mxu0 0
        %651 = vmatpush1.bf16.msra.mxu0 0
        %652 = vmatprep.subr.bf16.mxu0 0
        %653 = vmatpush1.bf16.msra.mxu0 0
        %654 = vmatprep.subr.bf16.mxu0 0
        %655 = vmatpush1.bf16.msra.mxu0 0
        %656 = vmatprep.subr.bf16.mxu0 0
        %657 = vmatpush1.bf16.msra.mxu0 0
        %658 = vmatprep.subr.bf16.mxu0 0
        %659 = vmatpush1.bf16.msra.mxu0 0
        %660 = vmatprep.mubr.bf16.mxu0 0
        %661 = vmatmul.mubr.bf16.gmra.mrb[0].mxu0 %v612
        %v662 = vpop.f32.mrb[0].mxu0
        %v663 = vadd.f32 0.0, %v662
        %v664 = vpop.f32.mrb[0].mxu0
        %v665 = vpop.f32.mrb[0].mxu0
        %v666 = vadd.f32 0.0, %v665
        %v667 = vpop.f32.mrb[0].mxu0
        %668 = vmatprep.mubr.bf16.mxu0 0
        %669 = vmatmul.mubr.bf16.gmra.mrb[0].mxu0 %v613
        %v670 = vpop.f32.mrb[0].mxu0
        %v671 = vadd.f32 0.0, %v670
        %v672 = vpop.f32.mrb[0].mxu0
        %v673 = vpop.f32.mrb[0].mxu0
        %v674 = vadd.f32 0.0, %v673
        %v675 = vpop.f32.mrb[0].mxu0
        %676 = vmatprep.mubr.bf16.mxu0 0
        %677 = vmatmul.mubr.bf16.gmra.mrb[0].mxu0 %v614
        %v678 = vpop.f32.mrb[0].mxu0
        %v679 = vadd.f32 0.0, %v678
        %v680 = vpop.f32.mrb[0].mxu0
        %v681 = vpop.f32.mrb[0].mxu0
        %v682 = vadd.f32 0.0, %v681
        %v683 = vpop.f32.mrb[0].mxu0
        %684 = vmatprep.mubr.bf16.mxu0 0
        %685 = vmatmul.mubr.bf16.gmra.mrb[0].mxu0 %v615
        %v686 = vpop.f32.mrb[0].mxu0
        %v687 = vadd.f32 0.0, %v686
        %v688 = vpop.f32.mrb[0].mxu0
        %v689 = vpop.f32.mrb[0].mxu0
        %v690 = vadd.f32 0.0, %v689
        %v691 = vpop.f32.mrb[0].mxu0
        %692 = vmatprep.mubr.bf16.mxu0 0
        %693 = vmatmul.mubr.bf16.gmra.mrb[0].mxu0 %v616
        %v694 = vpop.f32.mrb[0].mxu0
        %v695 = vadd.f32 0.0, %v694
        %v696 = vpop.f32.mrb[0].mxu0
        %v697 = vpop.f32.mrb[0].mxu0
        %v698 = vadd.f32 0.0, %v697
        %v699 = vpop.f32.mrb[0].mxu0
        %700 = vmatprep.mubr.bf16.mxu0 0
        %701 = vmatmul.mubr.bf16.gmra.mrb[0].mxu0 %v617
        %v702 = vpop.f32.mrb[0].mxu0
        %v703 = vadd.f32 0.0, %v702
        %v704 = vpop.f32.mrb[0].mxu0
        %v705 = vpop.f32.mrb[0].mxu0
        %v706 = vadd.f32 0.0, %v705
        %v707 = vpop.f32.mrb[0].mxu0
        %708 = vmatprep.mubr.bf16.mxu0 0
        %709 = vmatmul.mubr.bf16.gmra.mrb[0].mxu0 %v618
        %v710 = vpop.f32.mrb[0].mxu0
        %v711 = vadd.f32 0.0, %v710
        %v712 = vpop.f32.mrb[0].mxu0
        %v713 = vpop.f32.mrb[0].mxu0
        %v714 = vadd.f32 0.0, %v713
        %v715 = vpop.f32.mrb[0].mxu0
        %716 = vmatprep.mubr.bf16.mxu0 0
        %717 = vmatmul.mubr.bf16.gmra.mrb[0].mxu0 %v619
        %v718 = vpop.f32.mrb[0].mxu0
        %v719 = vadd.f32 0.0, %v718
        %v720 = vpop.f32.mrb[0].mxu0
        %v721 = vpop.f32.mrb[0].mxu0
        %v722 = vadd.f32 0.0, %v721
        %v723 = vpop.f32.mrb[0].mxu0
        %724 = vdwg.mxu0
        %v725 = vadd.f32 %v548, %v663
        %v726 = vadd.f32 %v549, %v666
        %v727 = vadd.f32 %v550, %v671
        %v728 = vadd.f32 %v551, %v674
        %v729 = vadd.f32 %v552, %v679
        %v730 = vadd.f32 %v553, %v682
        %v731 = vadd.f32 %v554, %v687
        %v732 = vadd.f32 %v555, %v690
        %v733 = vadd.f32 %v556, %v695
        %v734 = vadd.f32 %v557, %v698
        %v735 = vadd.f32 %v558, %v703
        %v736 = vadd.f32 %v559, %v706
        %v737 = vadd.f32 %v560, %v711
        %v738 = vadd.f32 %v561, %v714
        %v739 = vadd.f32 %v562, %v719
        %v740 = vadd.f32 %v563, %v722
        %741 = vst [vmem:[#allocation4] sm:$0xff] %v725
        %742 = vst [vmem:[#allocation4 + $0x8] sm:$0xff] %v726
        %743 = vst [vmem:[#allocation4 + $0x10] sm:$0xff] %v727
        %744 = vst [vmem:[#allocation4 + $0x18] sm:$0xff] %v728
        %745 = vst [vmem:[#allocation4 + $0x20] sm:$0xff] %v729
        %746 = vst [vmem:[#allocation4 + $0x28] sm:$0xff] %v730
        %747 = vst [vmem:[#allocation4 + $0x30] sm:$0xff] %v731
        %748 = vst [vmem:[#allocation4 + $0x38] sm:$0xff] %v732
        %749 = vst [vmem:[#allocation4 + $0x40] sm:$0xff] %v733
        %750 = vst [vmem:[#allocation4 + $0x48] sm:$0xff] %v734
        %751 = vst [vmem:[#allocation4 + $0x50] sm:$0xff] %v735
        %752 = vst [vmem:[#allocation4 + $0x58] sm:$0xff] %v736
        %753 = vst [vmem:[#allocation4 + $0x60] sm:$0xff] %v737
        %754 = vst [vmem:[#allocation4 + $0x68] sm:$0xff] %v738
        %755 = vst [vmem:[#allocation4 + $0x70] sm:$0xff] %v739
        %756 = vst [vmem:[#allocation4 + $0x78] sm:$0xff] %v740
      $region44: #{user_book_gnn_forward.3} parent=31 // pred_fallthru
        _
      %p757 = scmp.eq.s32.totalorder %s227, 0
      %p758 = pnand %p530, %p757
      %p759 = pneg %p758
      // Predicated region
      $region45: #{user_book_gnn_forward.3} parent=31 // pred_check
        _
      $region46: #{user_book_gnn_forward.3} parent=31 // pred_check_branch
        %761 = sbr.rel (%p758) target = $region48
      $region47: #{user_book_gnn_forward.3} parent=31 // pred_region
        %s762 = sadd.s32 %s248, 128
        %s763 = sshra.s32 %s762, 4
        %s764 = sand.u32 %s762, 15
        %s765 = smul.addr %s763, 8
        %s766 = scalar_lea.vmem [#allocation2], %s765
        %v767 = vld [vmem:[%s766] sm:$0xff]
        %v768 = vld [vmem:[%s766 + $0x8] sm:$0xff]
        %v769 = vld [vmem:[%s766 + $0x10] sm:$0xff]
        %v770 = vld [vmem:[%s766 + $0x18] sm:$0xff]
        %v771 = vld [vmem:[%s766 + $0x20] sm:$0xff]
        %v772 = vld [vmem:[%s766 + $0x28] sm:$0xff]
        %v773 = vld [vmem:[%s766 + $0x30] sm:$0xff]
        %v774 = vld [vmem:[%s766 + $0x38] sm:$0xff]
        %v775 = vld [vmem:[#allocation4] sm:$0xff]
        %v776 = vld [vmem:[#allocation4 + $0x8] sm:$0xff]
        %v777 = vld [vmem:[#allocation4 + $0x10] sm:$0xff]
        %v778 = vld [vmem:[#allocation4 + $0x18] sm:$0xff]
        %v779 = vld [vmem:[#allocation4 + $0x20] sm:$0xff]
        %v780 = vld [vmem:[#allocation4 + $0x28] sm:$0xff]
        %v781 = vld [vmem:[#allocation4 + $0x30] sm:$0xff]
        %v782 = vld [vmem:[#allocation4 + $0x38] sm:$0xff]
        %v783 = vld [vmem:[#allocation4 + $0x40] sm:$0xff]
        %v784 = vld [vmem:[#allocation4 + $0x48] sm:$0xff]
        %v785 = vld [vmem:[#allocation4 + $0x50] sm:$0xff]
        %v786 = vld [vmem:[#allocation4 + $0x58] sm:$0xff]
        %v787 = vld [vmem:[#allocation4 + $0x60] sm:$0xff]
        %v788 = vld [vmem:[#allocation4 + $0x68] sm:$0xff]
        %v789 = vld [vmem:[#allocation4 + $0x70] sm:$0xff]
        %v790 = vld [vmem:[#allocation4 + $0x78] sm:$0xff]
        %v791 = vld [vmem:[%s218] sm:$0xf]
        %v792 = vld [vmem:[%s218 + $0x4] sm:$0xf]
        %v793 = vld [vmem:[%s218 + $0x8] sm:$0xf]
        %v794 = vld [vmem:[%s218 + $0xc] sm:$0xf]
        %v795 = vld [vmem:[%s218 + $0x10] sm:$0xf]
        %v796 = vld [vmem:[%s218 + $0x14] sm:$0xf]
        %v797 = vld [vmem:[%s218 + $0x18] sm:$0xf]
        %v798 = vld [vmem:[%s218 + $0x1c] sm:$0xf]
        %v799 = vld [vmem:[%s218 + $0x20] sm:$0xf]
        %v800 = vld [vmem:[%s218 + $0x24] sm:$0xf]
        %v801 = vld [vmem:[%s218 + $0x28] sm:$0xf]
        %v802 = vld [vmem:[%s218 + $0x2c] sm:$0xf]
        %v803 = vld [vmem:[%s218 + $0x30] sm:$0xf]
        %v804 = vld [vmem:[%s218 + $0x34] sm:$0xf]
        %v805 = vld [vmem:[%s218 + $0x38] sm:$0xf]
        %v806 = vld [vmem:[%s218 + $0x3c] sm:$0xf]
        %v823 = vunpack.c.l.b16 %v791
        %v824 = vunpack.c.l.b16 %v792
        %v825 = vunpack.c.l.b16 %v793
        %v826 = vunpack.c.l.b16 %v794
        %v827 = vunpack.c.l.b16 %v795
        %v828 = vunpack.c.l.b16 %v796
        %v829 = vunpack.c.l.b16 %v797
        %v830 = vunpack.c.l.b16 %v798
        %v831 = vunpack.c.l.b16 %v799
        %v832 = vunpack.c.l.b16 %v800
        %v833 = vunpack.c.l.b16 %v801
        %v834 = vunpack.c.l.b16 %v802
        %v835 = vunpack.c.l.b16 %v803
        %v836 = vunpack.c.l.b16 %v804
        %v837 = vunpack.c.l.b16 %v805
        %v838 = vunpack.c.l.b16 %v806
        %v839 = vpack.c.b16 %v824, %v823
        %v840 = vpack.c.b16 %v826, %v825
        %v841 = vpack.c.b16 %v828, %v827
        %v842 = vpack.c.b16 %v830, %v829
        %v843 = vpack.c.b16 %v832, %v831
        %v844 = vpack.c.b16 %v834, %v833
        %v845 = vpack.c.b16 %v836, %v835
        %v846 = vpack.c.b16 %v838, %v837
        %855 = vmatprep.subr.bf16.mxu0 0
        %856 = vmatpush1.bf16.msra.mxu0 %v767
        %857 = vmatprep.subr.bf16.mxu0 0
        %858 = vmatpush1.bf16.msra.mxu0 %v768
        %859 = vmatprep.subr.bf16.mxu0 0
        %860 = vmatpush1.bf16.msra.mxu0 %v769
        %861 = vmatprep.subr.bf16.mxu0 0
        %862 = vmatpush1.bf16.msra.mxu0 %v770
        %863 = vmatprep.subr.bf16.mxu0 0
        %864 = vmatpush1.bf16.msra.mxu0 %v771
        %865 = vmatprep.subr.bf16.mxu0 0
        %866 = vmatpush1.bf16.msra.mxu0 %v772
        %867 = vmatprep.subr.bf16.mxu0 0
        %868 = vmatpush1.bf16.msra.mxu0 %v773
        %869 = vmatprep.subr.bf16.mxu0 0
        %870 = vmatpush1.bf16.msra.mxu0 %v774
        %871 = vmatprep.subr.bf16.mxu0 0
        %872 = vmatpush1.bf16.msra.mxu0 0
        %873 = vmatprep.subr.bf16.mxu0 0
        %874 = vmatpush1.bf16.msra.mxu0 0
        %875 = vmatprep.subr.bf16.mxu0 0
        %876 = vmatpush1.bf16.msra.mxu0 0
        %877 = vmatprep.subr.bf16.mxu0 0
        %878 = vmatpush1.bf16.msra.mxu0 0
        %879 = vmatprep.subr.bf16.mxu0 0
        %880 = vmatpush1.bf16.msra.mxu0 0
        %881 = vmatprep.subr.bf16.mxu0 0
        %882 = vmatpush1.bf16.msra.mxu0 0
        %883 = vmatprep.subr.bf16.mxu0 0
        %884 = vmatpush1.bf16.msra.mxu0 0
        %885 = vmatprep.subr.bf16.mxu0 0
        %886 = vmatpush1.bf16.msra.mxu0 0
        %887 = vmatprep.mubr.bf16.mxu0 0
        %888 = vmatmul.mubr.bf16.gmra.mrb[0].mxu0 %v839
        %v889 = vpop.f32.mrb[0].mxu0
        %v890 = vadd.f32 0.0, %v889
        %v891 = vpop.f32.mrb[0].mxu0
        %v892 = vpop.f32.mrb[0].mxu0
        %v893 = vadd.f32 0.0, %v892
        %v894 = vpop.f32.mrb[0].mxu0
        %895 = vmatprep.mubr.bf16.mxu0 0
        %896 = vmatmul.mubr.bf16.gmra.mrb[0].mxu0 %v840
        %v897 = vpop.f32.mrb[0].mxu0
        %v898 = vadd.f32 0.0, %v897
        %v899 = vpop.f32.mrb[0].mxu0
        %v900 = vpop.f32.mrb[0].mxu0
        %v901 = vadd.f32 0.0, %v900
        %v902 = vpop.f32.mrb[0].mxu0
        %903 = vmatprep.mubr.bf16.mxu0 0
        %904 = vmatmul.mubr.bf16.gmra.mrb[0].mxu0 %v841
        %v905 = vpop.f32.mrb[0].mxu0
        %v906 = vadd.f32 0.0, %v905
        %v907 = vpop.f32.mrb[0].mxu0
        %v908 = vpop.f32.mrb[0].mxu0
        %v909 = vadd.f32 0.0, %v908
        %v910 = vpop.f32.mrb[0].mxu0
        %911 = vmatprep.mubr.bf16.mxu0 0
        %912 = vmatmul.mubr.bf16.gmra.mrb[0].mxu0 %v842
        %v913 = vpop.f32.mrb[0].mxu0
        %v914 = vadd.f32 0.0, %v913
        %v915 = vpop.f32.mrb[0].mxu0
        %v916 = vpop.f32.mrb[0].mxu0
        %v917 = vadd.f32 0.0, %v916
        %v918 = vpop.f32.mrb[0].mxu0
        %919 = vmatprep.mubr.bf16.mxu0 0
        %920 = vmatmul.mubr.bf16.gmra.mrb[0].mxu0 %v843
        %v921 = vpop.f32.mrb[0].mxu0
        %v922 = vadd.f32 0.0, %v921
        %v923 = vpop.f32.mrb[0].mxu0
        %v924 = vpop.f32.mrb[0].mxu0
        %v925 = vadd.f32 0.0, %v924
        %v926 = vpop.f32.mrb[0].mxu0
        %927 = vmatprep.mubr.bf16.mxu0 0
        %928 = vmatmul.mubr.bf16.gmra.mrb[0].mxu0 %v844
        %v929 = vpop.f32.mrb[0].mxu0
        %v930 = vadd.f32 0.0, %v929
        %v931 = vpop.f32.mrb[0].mxu0
        %v932 = vpop.f32.mrb[0].mxu0
        %v933 = vadd.f32 0.0, %v932
        %v934 = vpop.f32.mrb[0].mxu0
        %935 = vmatprep.mubr.bf16.mxu0 0
        %936 = vmatmul.mubr.bf16.gmra.mrb[0].mxu0 %v845
        %v937 = vpop.f32.mrb[0].mxu0
        %v938 = vadd.f32 0.0, %v937
        %v939 = vpop.f32.mrb[0].mxu0
        %v940 = vpop.f32.mrb[0].mxu0
        %v941 = vadd.f32 0.0, %v940
        %v942 = vpop.f32.mrb[0].mxu0
        %943 = vmatprep.mubr.bf16.mxu0 0
        %944 = vmatmul.mubr.bf16.gmra.mrb[0].mxu0 %v846
        %v945 = vpop.f32.mrb[0].mxu0
        %v946 = vadd.f32 0.0, %v945
        %v947 = vpop.f32.mrb[0].mxu0
        %v948 = vpop.f32.mrb[0].mxu0
        %v949 = vadd.f32 0.0, %v948
        %v950 = vpop.f32.mrb[0].mxu0
        %951 = vdwg.mxu0
        %v952 = vadd.f32 %v775, %v890
        %v953 = vadd.f32 %v776, %v893
        %v954 = vadd.f32 %v777, %v898
        %v955 = vadd.f32 %v778, %v901
        %v956 = vadd.f32 %v779, %v906
        %v957 = vadd.f32 %v780, %v909
        %v958 = vadd.f32 %v781, %v914
        %v959 = vadd.f32 %v782, %v917
        %v960 = vadd.f32 %v783, %v922
        %v961 = vadd.f32 %v784, %v925
        %v962 = vadd.f32 %v785, %v930
        %v963 = vadd.f32 %v786, %v933
        %v964 = vadd.f32 %v787, %v938
        %v965 = vadd.f32 %v788, %v941
        %v966 = vadd.f32 %v789, %v946
        %v967 = vadd.f32 %v790, %v949
        %968 = vst [vmem:[#allocation4] sm:$0xff] %v952
        %969 = vst [vmem:[#allocation4 + $0x8] sm:$0xff] %v953
        %970 = vst [vmem:[#allocation4 + $0x10] sm:$0xff] %v954
        %971 = vst [vmem:[#allocation4 + $0x18] sm:$0xff] %v955
        %972 = vst [vmem:[#allocation4 + $0x20] sm:$0xff] %v956
        %973 = vst [vmem:[#allocation4 + $0x28] sm:$0xff] %v957
        %974 = vst [vmem:[#allocation4 + $0x30] sm:$0xff] %v958
        %975 = vst [vmem:[#allocation4 + $0x38] sm:$0xff] %v959
        %976 = vst [vmem:[#allocation4 + $0x40] sm:$0xff] %v960
        %977 = vst [vmem:[#allocation4 + $0x48] sm:$0xff] %v961
        %978 = vst [vmem:[#allocation4 + $0x50] sm:$0xff] %v962
        %979 = vst [vmem:[#allocation4 + $0x58] sm:$0xff] %v963
        %980 = vst [vmem:[#allocation4 + $0x60] sm:$0xff] %v964
        %981 = vst [vmem:[#allocation4 + $0x68] sm:$0xff] %v965
        %982 = vst [vmem:[#allocation4 + $0x70] sm:$0xff] %v966
        %983 = vst [vmem:[#allocation4 + $0x78] sm:$0xff] %v967
      $region48: #{user_book_gnn_forward.3} parent=31 // pred_fallthru
        _
      // Predicated region
      $region49: #{user_book_gnn_forward.3} parent=31 // pred_check
        %p984 = pneg %p228
      $region50: #{user_book_gnn_forward.3} parent=31 // pred_check_branch
        %986 = sbr.rel (%p984) target = $region52
      $region51: #{user_book_gnn_forward.3} parent=31 // pred_region
        %s987 = smul.u32 %s20, 128
        %v988 = vld [vmem:[#allocation4] sm:$0xff]
        %v989 = vld [vmem:[#allocation4 + $0x8] sm:$0xff]
        %v990 = vld [vmem:[#allocation4 + $0x10] sm:$0xff]
        %v991 = vld [vmem:[#allocation4 + $0x18] sm:$0xff]
        %v992 = vld [vmem:[#allocation4 + $0x20] sm:$0xff]
        %v993 = vld [vmem:[#allocation4 + $0x28] sm:$0xff]
        %v994 = vld [vmem:[#allocation4 + $0x30] sm:$0xff]
        %v995 = vld [vmem:[#allocation4 + $0x38] sm:$0xff]
        %v996 = vld [vmem:[#allocation4 + $0x40] sm:$0xff]
        %v997 = vld [vmem:[#allocation4 + $0x48] sm:$0xff]
        %v998 = vld [vmem:[#allocation4 + $0x50] sm:$0xff]
        %v999 = vld [vmem:[#allocation4 + $0x58] sm:$0xff]
        %v1000 = vld [vmem:[#allocation4 + $0x60] sm:$0xff]
        %v1001 = vld [vmem:[#allocation4 + $0x68] sm:$0xff]
        %v1002 = vld [vmem:[#allocation4 + $0x70] sm:$0xff]
        %v1003 = vld [vmem:[#allocation4 + $0x78] sm:$0xff]
        %v1004 = vld [vmem:[%s209] sm:$0xff]
        %v1005 = vld [vmem:[%s209 + $0x8] sm:$0xff]
        %v1006 = vld [vmem:[%s209 + $0x10] sm:$0xff]
        %v1007 = vld [vmem:[%s209 + $0x18] sm:$0xff]
        %v1008 = vld [vmem:[%s209 + $0x20] sm:$0xff]
        %v1009 = vld [vmem:[%s209 + $0x28] sm:$0xff]
        %v1010 = vld [vmem:[%s209 + $0x30] sm:$0xff]
        %v1011 = vld [vmem:[%s209 + $0x38] sm:$0xff]
        %v1012 = vld [vmem:[%s209 + $0x40] sm:$0xff]
        %v1013 = vld [vmem:[%s209 + $0x48] sm:$0xff]
        %v1014 = vld [vmem:[%s209 + $0x50] sm:$0xff]
        %v1015 = vld [vmem:[%s209 + $0x58] sm:$0xff]
        %v1016 = vld [vmem:[%s209 + $0x60] sm:$0xff]
        %v1017 = vld [vmem:[%s209 + $0x68] sm:$0xff]
        %v1018 = vld [vmem:[%s209 + $0x70] sm:$0xff]
        %v1019 = vld [vmem:[%s209 + $0x78] sm:$0xff]
        %s1020 = scalar_lea.vmem [#allocation3], %s987
        %v1021 = vld [vmem:[%s1020] sm:$0xff]
        %v1022 = vld [vmem:[%s1020 + $0x8] sm:$0xff]
        %v1023 = vld [vmem:[%s1020 + $0x10] sm:$0xff]
        %v1024 = vld [vmem:[%s1020 + $0x18] sm:$0xff]
        %v1025 = vld [vmem:[%s1020 + $0x20] sm:$0xff]
        %v1026 = vld [vmem:[%s1020 + $0x28] sm:$0xff]
        %v1027 = vld [vmem:[%s1020 + $0x30] sm:$0xff]
        %v1028 = vld [vmem:[%s1020 + $0x38] sm:$0xff]
        %v1029 = vld [vmem:[%s1020 + $0x40] sm:$0xff]
        %v1030 = vld [vmem:[%s1020 + $0x48] sm:$0xff]
        %v1031 = vld [vmem:[%s1020 + $0x50] sm:$0xff]
        %v1032 = vld [vmem:[%s1020 + $0x58] sm:$0xff]
        %v1033 = vld [vmem:[%s1020 + $0x60] sm:$0xff]
        %v1034 = vld [vmem:[%s1020 + $0x68] sm:$0xff]
        %v1035 = vld [vmem:[%s1020 + $0x70] sm:$0xff]
        %v1036 = vld [vmem:[%s1020 + $0x78] sm:$0xff]
        %s1037 = scalar_select %p249, 1, 0
        %v1038 = vstv %s1037
        %vm1039 = vcmp.eq.s32.totalorder %v1038, 1
        %v1040 = vsel %vm1039, %v1004, %v1021
        %v1041 = vsel %vm1039, %v1005, %v1022
        %v1042 = vsel %vm1039, %v1006, %v1023
        %v1043 = vsel %vm1039, %v1007, %v1024
        %v1044 = vsel %vm1039, %v1008, %v1025
        %v1045 = vsel %vm1039, %v1009, %v1026
        %v1046 = vsel %vm1039, %v1010, %v1027
        %v1047 = vsel %vm1039, %v1011, %v1028
        %v1048 = vsel %vm1039, %v1012, %v1029
        %v1049 = vsel %vm1039, %v1013, %v1030
        %v1050 = vsel %vm1039, %v1014, %v1031
        %v1051 = vsel %vm1039, %v1015, %v1032
        %v1052 = vsel %vm1039, %v1016, %v1033
        %v1053 = vsel %vm1039, %v1017, %v1034
        %v1054 = vsel %vm1039, %v1018, %v1035
        %v1055 = vsel %vm1039, %v1019, %v1036
        %v1056 = vadd.f32 %v1040, %v988
        %v1057 = vadd.f32 %v1041, %v989
        %v1058 = vadd.f32 %v1042, %v990
        %v1059 = vadd.f32 %v1043, %v991
        %v1060 = vadd.f32 %v1044, %v992
        %v1061 = vadd.f32 %v1045, %v993
        %v1062 = vadd.f32 %v1046, %v994
        %v1063 = vadd.f32 %v1047, %v995
        %v1064 = vadd.f32 %v1048, %v996
        %v1065 = vadd.f32 %v1049, %v997
        %v1066 = vadd.f32 %v1050, %v998
        %v1067 = vadd.f32 %v1051, %v999
        %v1068 = vadd.f32 %v1052, %v1000
        %v1069 = vadd.f32 %v1053, %v1001
        %v1070 = vadd.f32 %v1054, %v1002
        %v1071 = vadd.f32 %v1055, %v1003
        %1072 = vst [vmem:[%s1020] sm:$0xff] %v1056
        %1073 = vst [vmem:[%s1020 + $0x8] sm:$0xff] %v1057
        %1074 = vst [vmem:[%s1020 + $0x10] sm:$0xff] %v1058
        %1075 = vst [vmem:[%s1020 + $0x18] sm:$0xff] %v1059
        %1076 = vst [vmem:[%s1020 + $0x20] sm:$0xff] %v1060
        %1077 = vst [vmem:[%s1020 + $0x28] sm:$0xff] %v1061
        %1078 = vst [vmem:[%s1020 + $0x30] sm:$0xff] %v1062
        %1079 = vst [vmem:[%s1020 + $0x38] sm:$0xff] %v1063
        %1080 = vst [vmem:[%s1020 + $0x40] sm:$0xff] %v1064
        %1081 = vst [vmem:[%s1020 + $0x48] sm:$0xff] %v1065
        %1082 = vst [vmem:[%s1020 + $0x50] sm:$0xff] %v1066
        %1083 = vst [vmem:[%s1020 + $0x58] sm:$0xff] %v1067
        %1084 = vst [vmem:[%s1020 + $0x60] sm:$0xff] %v1068
        %1085 = vst [vmem:[%s1020 + $0x68] sm:$0xff] %v1069
        %1086 = vst [vmem:[%s1020 + $0x70] sm:$0xff] %v1070
        %1087 = vst [vmem:[%s1020 + $0x78] sm:$0xff] %v1071
        %p1088 = scmp.lt.s32.totalorder %s19, 1
        // Predicated region
        $region53: #{user_book_gnn_forward.3} parent=51 // pred_check
          %p1089 = pneg %p1088
        $region54: #{user_book_gnn_forward.3} parent=51 // pred_check_branch
          %1091 = sbr.rel (%p1089) target = $region56
        $region55: #{user_book_gnn_forward.3} parent=51 // pred_region
          %v1092 = vpack.c.bf16 %v989, %v988
          %v1093 = vpack.c.bf16 %v991, %v990
          %v1094 = vpack.c.bf16 %v993, %v992
          %v1095 = vpack.c.bf16 %v995, %v994
          %v1096 = vpack.c.bf16 %v997, %v996
          %v1097 = vpack.c.bf16 %v999, %v998
          %v1098 = vpack.c.bf16 %v1001, %v1000
          %v1099 = vpack.c.bf16 %v1003, %v1002
          // Predicated region
          $region57: #{user_book_gnn_forward.3} parent=55 // pred_check
            %p1100 = pneg %p757
          $region58: #{user_book_gnn_forward.3} parent=55 // pred_check_branch
            %1102 = sbr.rel (%p1100) target = $region60
          $region59: #{user_book_gnn_forward.3} parent=55 // pred_region
            %s1103 = sshra.s32 %s987, 4
            %s1104 = sand.u32 %s987, 15
            %s1105 = smul.addr %s1103, 8
            %s1106 = scalar_lea.vmem [#allocation2], %s1105
            %1107 = vst [vmem:[%s1106] sm:$0xff] %v1092
            %1108 = vst [vmem:[%s1106 + $0x8] sm:$0xff] %v1093
            %1109 = vst [vmem:[%s1106 + $0x10] sm:$0xff] %v1094
            %1110 = vst [vmem:[%s1106 + $0x18] sm:$0xff] %v1095
            %1111 = vst [vmem:[%s1106 + $0x20] sm:$0xff] %v1096
            %1112 = vst [vmem:[%s1106 + $0x28] sm:$0xff] %v1097
            %1113 = vst [vmem:[%s1106 + $0x30] sm:$0xff] %v1098
            %1114 = vst [vmem:[%s1106 + $0x38] sm:$0xff] %v1099
          $region60: #{user_book_gnn_forward.3} parent=55 // pred_fallthru
            _
          // Predicated region
          $region61: #{user_book_gnn_forward.3} parent=55 // pred_check
            %p1115 = pneg %p531
          $region62: #{user_book_gnn_forward.3} parent=55 // pred_check_branch
            %1117 = sbr.rel (%p1115) target = $region64
          $region63: #{user_book_gnn_forward.3} parent=55 // pred_region
            %s1118 = sadd.s32 %s987, 128
            %s1119 = sshra.s32 %s1118, 4
            %s1120 = sand.u32 %s1118, 15
            %s1121 = smul.addr %s1119, 8
            %s1122 = scalar_lea.vmem [#allocation2], %s1121
            %1123 = vst [vmem:[%s1122] sm:$0xff] %v1092
            %1124 = vst [vmem:[%s1122 + $0x8] sm:$0xff] %v1093
            %1125 = vst [vmem:[%s1122 + $0x10] sm:$0xff] %v1094
            %1126 = vst [vmem:[%s1122 + $0x18] sm:$0xff] %v1095
            %1127 = vst [vmem:[%s1122 + $0x20] sm:$0xff] %v1096
            %1128 = vst [vmem:[%s1122 + $0x28] sm:$0xff] %v1097
            %1129 = vst [vmem:[%s1122 + $0x30] sm:$0xff] %v1098
            %1130 = vst [vmem:[%s1122 + $0x38] sm:$0xff] %v1099
          $region64: #{user_book_gnn_forward.3} parent=55 // pred_fallthru
            _
        $region56: #{user_book_gnn_forward.3} parent=51 // pred_fallthru
          _
        %p1131 = scmp.eq.s32.totalorder %s19, 1
        // Predicated region
        $region65: #{user_book_gnn_forward.3} parent=51 // pred_check
          %p1132 = pneg %p1131
        $region66: #{user_book_gnn_forward.3} parent=51 // pred_check_branch
          %1134 = sbr.rel (%p1132) target = $region68
        $region67: #{user_book_gnn_forward.3} parent=51 // pred_region
          %v1135 = vmul.f32 %v1056, 0.33333334
          %v1136 = vmul.f32 %v1057, 0.33333334
          %v1137 = vmul.f32 %v1058, 0.33333334
          %v1138 = vmul.f32 %v1059, 0.33333334
          %v1139 = vmul.f32 %v1060, 0.33333334
          %v1140 = vmul.f32 %v1061, 0.33333334
          %v1141 = vmul.f32 %v1062, 0.33333334
          %v1142 = vmul.f32 %v1063, 0.33333334
          %v1143 = vmul.f32 %v1064, 0.33333334
          %v1144 = vmul.f32 %v1065, 0.33333334
          %v1145 = vmul.f32 %v1066, 0.33333334
          %v1146 = vmul.f32 %v1067, 0.33333334
          %v1147 = vmul.f32 %v1068, 0.33333334
          %v1148 = vmul.f32 %v1069, 0.33333334
          %v1149 = vmul.f32 %v1070, 0.33333334
          %v1150 = vmul.f32 %v1071, 0.33333334
          %1151 = vst [vmem:[%s224] sm:$0xff] %v1135
          %1152 = vst [vmem:[%s224 + $0x8] sm:$0xff] %v1136
          %1153 = vst [vmem:[%s224 + $0x10] sm:$0xff] %v1137
          %1154 = vst [vmem:[%s224 + $0x18] sm:$0xff] %v1138
          %1155 = vst [vmem:[%s224 + $0x20] sm:$0xff] %v1139
          %1156 = vst [vmem:[%s224 + $0x28] sm:$0xff] %v1140
          %1157 = vst [vmem:[%s224 + $0x30] sm:$0xff] %v1141
          %1158 = vst [vmem:[%s224 + $0x38] sm:$0xff] %v1142
          %1159 = vst [vmem:[%s224 + $0x40] sm:$0xff] %v1143
          %1160 = vst [vmem:[%s224 + $0x48] sm:$0xff] %v1144
          %1161 = vst [vmem:[%s224 + $0x50] sm:$0xff] %v1145
          %1162 = vst [vmem:[%s224 + $0x58] sm:$0xff] %v1146
          %1163 = vst [vmem:[%s224 + $0x60] sm:$0xff] %v1147
          %1164 = vst [vmem:[%s224 + $0x68] sm:$0xff] %v1148
          %1165 = vst [vmem:[%s224 + $0x70] sm:$0xff] %v1149
          %1166 = vst [vmem:[%s224 + $0x78] sm:$0xff] %v1150
        $region68: #{user_book_gnn_forward.3} parent=51 // pred_fallthru
          _
      $region52: #{user_book_gnn_forward.3} parent=31 // pred_fallthru
        _
      %s1167 = smul.u32 16, %s20
      %p1168 = scmp.lt.s32.totalorder %s1167, 15
      %s1169 = scalar_select %p1168, %s1167, 15
      %s1170 = smul.addr %s1169, 8
      %s1171 = scalar_lea.vmem %s3, %s1170
      // Predicated region
      $region69: #{user_book_gnn_forward.3} parent=31 // pred_check
        %p1172 = pneg %p126
      $region70: #{user_book_gnn_forward.3} parent=31 // pred_check_branch
        %1174 = sbr.rel (%p1172) target = $region72
      $region71: #{user_book_gnn_forward.3} parent=31 // pred_region
        %s1175 = smul.u32 16, %s20
      $region72: #{user_book_gnn_forward.3} parent=31 // pred_fallthru
        _
      // Predicated region
      $region73: #{user_book_gnn_forward.3} parent=31 // pred_check
        %p1176 = pneg %p126
      $region74: #{user_book_gnn_forward.3} parent=31 // pred_check_branch
        %1178 = sbr.rel (%p1176) target = $region76
      $region75: #{user_book_gnn_forward.3} parent=31 // pred_region
        %s1179 = smul.u32 16, %s20
        %p1180 = scmp.lt.s32.totalorder %s1179, 15
        %s1181 = scalar_select %p1180, %s1179, 15
        %s1182 = smul.addr %s1181, 8
        %s1183 = scalar_lea.vmem %s3, %s1182
      $region76: #{user_book_gnn_forward.3} parent=31 // pred_fallthru
        _
    $region32: #{user_book_gnn_forward.3} parent=5 // pred_fallthru
      _
    %p1184 = scmp.le.s32.totalorder 2, %s9
    // Predicated region
    $region77: #{user_book_gnn_forward.3} parent=5 // pred_check
      %p1185 = pneg %p1184
    $region78: #{user_book_gnn_forward.3} parent=5 // pred_check_branch
      %1187 = sbr.rel (%p1185) target = $region80
    $region79: #{user_book_gnn_forward.3} parent=5 // pred_region
      %s1188 = ssub.s32 %s9, 2
    $region80: #{user_book_gnn_forward.3} parent=5 // pred_fallthru
      _
  $region6: #{user_book_gnn_forward.3} parent=0 // loop_footer
    %s13 = sadd.s32 1, %s9
  $region7: #{user_book_gnn_forward.3} parent=0 // loop_footer_branch
    %8 = sbr.rel target = $region3
  $region8: #{user_book_gnn_forward.3} parent=0 // loop_exit
    _

</llo_original>
